<compile_context>
chip_gen: v7x
topology: tpu7x:2x2x1
jax: 0.10.0
libtpu: 0.0.40
codegen_flags: <defaults>
</compile_context>

<pallas_src>
import functools

import jax
import jax.numpy as jnp
from jax.experimental import pallas as pl
from jax.experimental.pallas import tpu as pltpu

# ----------------------------- model config ---------------------------------
MODEL = dict(n_stages=2, n_blocks=3, n_kernels=32, tf_filter=3)
IN_CHANNELS = 16
N_CLASSES = 8
BATCH = 2
LENGTH = 128  # lane-aligned sequence length


def _make_kernel(n_stages, n_blocks, n_kernels, tf_filter, batch, seg_len):
    """batch folded into the lane axis inside the kernel; seg_len = L."""
    assert tf_filter == 3, "residual add requires kernel_size == 3"
    # Zero-padded conv semantics via in-segment shifts require d < L.
    assert 2 ** (n_blocks - 1) < seg_len, "max dilation must be < sequence length"

    K, L, B = n_kernels, seg_len, batch

    def kernel(x_ref, w_in_ref, b_in_ref, w_dil_ref, b_dil_ref,
               w_out_ref, b_out_ref, o_ref, h_stack_ref):
        # ---- conv1x1_in: fold batch into lanes, one channel-mixing matmul ---
        x_slab = jnp.concatenate([x_ref[b] for b in range(B)], axis=1)  # [C_in, B*L]
        h = jnp.dot(w_in_ref[...], x_slab,
                    preferred_element_type=jnp.float32) + b_in_ref[...]  # [K, B*L]

        # ---- stages of dilated residual blocks (dilation = 2**block) --------
        for s in range(n_stages):
            for blk in range(n_blocks):
                d = 2 ** blk
                wd = w_dil_ref[s, blk]           # [K, 3K]  (tap-major packed)
                bd = b_dil_ref[s, blk]           # [K, 1]

                # Build the [3K, B*L] stacked operand directly in persistent
                # VMEM scratch.  Row layout matches the packed weights:
                #   [0:K)   left tap   h[:, t-d]  (0 before segment start)
                #   [K:2K)  center     h[:, t]
                #   [2K:3K) right tap  h[:, t+d]  (0 past segment end)
                h_stack_ref[K:2 * K, :] = h
                for b in range(B):
                    lo, hi = b * L, (b + 1) * L
                    # left tap: shift right by d within the segment.
                    h_stack_ref[0:K, lo:lo + d] = jnp.zeros((K, d), jnp.float32)
                    h_stack_ref[0:K, lo + d:hi] = h[:, lo:hi - d]
                    # right tap: shift left by d within the segment.
                    h_stack_ref[2 * K:3 * K, lo:hi - d] = h[:, lo + d:hi]
                    h_stack_ref[2 * K:3 * K, hi - d:hi] = jnp.zeros((K, d),
                                                                    jnp.float32)

                # All three taps fused into one 96-deep MXU matmul.
                y = jnp.dot(wd, h_stack_ref[...],
                            preferred_element_type=jnp.float32) + bd
                h = jax.nn.relu(y) + h           # out = relu(convDilated(x)) + x

        # ---- conv1x1_out, stored directly as (B, n_classes, L) --------------
        out = jnp.dot(w_out_ref[...], h,
                      preferred_element_type=jnp.float32) + b_out_ref[...]
        for b in range(B):
            o_ref[b] = out[:, b * L:(b + 1) * L]

    return kernel


def timeinator_forward(x, params, model_cfg, n_classes):
    B, C_in, L = x.shape
    S, NB = model_cfg['n_stages'], model_cfg['n_blocks']
    K, tf = model_cfg['n_kernels'], model_cfg['tf_filter']
    w_in, b_in, w_dil, b_dil, w_out, b_out = params

    # Pack the taps into the contraction axis:
    #   packed[s,b,o, k*K + c] = w_dil[s,b,o,c,k]   -> [S, NB, K, tf*K]
    w_dil_packed = jnp.transpose(w_dil, (0, 1, 2, 4, 3)).reshape(S, NB, K, tf * K)

    kernel = _make_kernel(S, NB, K, tf, B, L)

    flops = 2 * B * L * (K * C_in + S * NB * K * (tf * K) + n_classes * K)
    bytes_accessed = 4 * (x.size + w_in.size + b_in.size + w_dil_packed.size
                          + b_dil.size + w_out.size + b_out.size
                          + n_classes * B * L)

    vmem_spec = pl.BlockSpec(memory_space=pltpu.MemorySpace.VMEM)

    # Grid-less call: whole operands resident in VMEM (<0.5 MiB total), no
    # pipeline prologue and no double-buffering for a single-step kernel.
    # NOTE(v7x): 2 TensorCores per chip -- a parallel split of the folded
    #   256-lane axis (or grid=(B,)) could use both cores; at ~1-2 us of
    #   in-kernel work the single launch is the generation-agnostic choice.
    # NOTE(VMEM scaling): if B*L ever grows, tile the lane axis with a grid
    #   and keep per-step temporaries (~(6-8)*K*tile_BL*4 B plus the
    #   double-buffered input) under the scoped VMEM limit; v7x has 64 MiB
    #   physical / 32 MiB scoped default -- half of v5e/v6e -- so set
    #   vmem_limit_bytes explicitly when tiling.
    out = pl.pallas_call(
        kernel,
        out_shape=jax.ShapeDtypeStruct((B, n_classes, L), jnp.float32),
        in_specs=[vmem_spec] * 7,
        out_specs=vmem_spec,
        scratch_shapes=[pltpu.VMEM((tf * K, B * L), jnp.float32)],
        cost_estimate=pl.CostEstimate(flops=flops, transcendentals=0,
                                      bytes_accessed=bytes_accessed),
    )(x, w_in, b_in, w_dil_packed, b_dil, w_out, b_out)

    return out  # already (B, n_classes, L); no wrapper-side transposes


# --------------------------- plain-JAX reference -----------------------------
def timeinator_reference(x, params, model_cfg):
    w_in, b_in, w_dil, b_dil, w_out, b_out = params
    n_stages, n_blocks, tf = (model_cfg['n_stages'], model_cfg['n_blocks'],
                              model_cfg['tf_filter'])
    hp = jax.lax.Precision.HIGHEST

    def shift_b(h, off):   # h: [B, K, L]
        if off == 0:
            return h
        z = jnp.zeros(h.shape[:2] + (abs(off),), h.dtype)
        if off > 0:
            return jnp.concatenate([h[..., off:], z], axis=-1)
        return jnp.concatenate([z, h[..., :off]], axis=-1)

    h = jnp.einsum('oc,bcl->bol', w_in, x, precision=hp) + b_in[None]
    for s in range(n_stages):
        for b in range(n_blocks):
            d = 2 ** b
            y = sum(jnp.einsum('oc,bcl->bol', w_dil[s, b, :, :, k],
                               shift_b(h, (k - 1) * d), precision=hp)
                    for k in range(tf))
            h = jax.nn.relu(y + b_dil[s, b][None]) + h
    return jnp.einsum('oc,bcl->bol', w_out, h, precision=hp) + b_out[None]


# ------------------------------- parameters ----------------------------------
def init_params(key, in_channels, n_classes, cfg):
    n_stages, n_blocks, K, tf = (cfg['n_stages'], cfg['n_blocks'],
                                 cfg['n_kernels'], cfg['tf_filter'])
    ks = jax.random.split(key, 6)
    s = 0.1
    w_in = s * jax.random.normal(ks[0], (K, in_channels), jnp.float32)
    b_in = s * jax.random.normal(ks[1], (K, 1), jnp.float32)
    w_dil = s * jax.random.normal(ks[2], (n_stages, n_blocks, K, K, tf),
                                  jnp.float32)
    b_dil = s * jax.random.normal(ks[3], (n_stages, n_blocks, K, 1),
                                  jnp.float32)
    w_out = s * jax.random.normal(ks[4], (n_classes, K), jnp.float32)
    b_out = s * jax.random.normal(ks[5], (n_classes, 1), jnp.float32)
    return (w_in, b_in, w_dil, b_dil, w_out, b_out)


if __name__ == "__main__":
    key = jax.random.PRNGKey(0)
    kx, kp = jax.random.split(key)
    x = jax.random.normal(kx, (BATCH, IN_CHANNELS, LENGTH), jnp.float32)
    params = init_params(kp, IN_CHANNELS, N_CLASSES, MODEL)

    fwd = jax.jit(functools.partial(timeinator_forward,
                                    model_cfg=MODEL, n_classes=N_CLASSES))
    out = jax.block_until_ready(fwd(x, params))

    ref = timeinator_reference(x, params, MODEL)
    assert out.shape == (BATCH, N_CLASSES, LENGTH), out.shape
    max_err = float(jnp.max(jnp.abs(out - ref)))
    assert jnp.allclose(out, ref, atol=1e-3, rtol=1e-3), f"mismatch: {max_err}"
    print("KERNEL_OK")
</pallas_src>

<mosaic_0001>
module attributes {stable_mosaic.version = 11 : i64} {
  func.func @kernel(%arg0: memref<2x16x128xf32, #tpu.memory_space<vmem>>, %arg1: memref<32x16xf32, #tpu.memory_space<vmem>>, %arg2: memref<32x1xf32, #tpu.memory_space<vmem>>, %arg3: memref<2x3x32x96xf32, #tpu.memory_space<vmem>>, %arg4: memref<2x3x32x1xf32, #tpu.memory_space<vmem>>, %arg5: memref<8x32xf32, #tpu.memory_space<vmem>>, %arg6: memref<8x1xf32, #tpu.memory_space<vmem>>, %arg7: memref<2x8x128xf32, #tpu.memory_space<vmem>>, %arg8: memref<96x256xf32, #tpu.memory_space<vmem>>) attributes {dimension_semantics = [], scalar_prefetch = 0 : i64, scratch_operands = 1 : i64, tpu.core_type = #tpu.core_type<tc>} {
    %c0 = arith.constant 0 : index
    %c0_0 = arith.constant 0 : index
    %c0_1 = arith.constant 0 : index
    %0 = vector.load %arg0[%c0, %c0_0, %c0_1] : memref<2x16x128xf32, #tpu.memory_space<vmem>>, vector<1x16x128xf32>
    %1 = vector.shape_cast %0 : vector<1x16x128xf32> to vector<16x128xf32>
    %c1 = arith.constant 1 : index
    %c0_2 = arith.constant 0 : index
    %c0_3 = arith.constant 0 : index
    %2 = vector.load %arg0[%c1, %c0_2, %c0_3] : memref<2x16x128xf32, #tpu.memory_space<vmem>>, vector<1x16x128xf32>
    %3 = vector.shape_cast %2 : vector<1x16x128xf32> to vector<16x128xf32>
    %4 = tpu.concatenate %1, %3 in 1 : vector<16x128xf32>, vector<16x128xf32> -> vector<16x256xf32>
    %c0_4 = arith.constant 0 : index
    %c0_5 = arith.constant 0 : index
    %5 = vector.load %arg1[%c0_4, %c0_5] : memref<32x16xf32, #tpu.memory_space<vmem>>, vector<32x16xf32>
    %cst = arith.constant dense<0.000000e+00> : vector<32x256xf32>
    %6 = tpu.matmul %5, %4, %cst {dimension_numbers = #tpu.dot_dimension_numbers<[1], [0], [0], [1], [0, 0, 1, 1], [], []>} : vector<32x16xf32>, vector<16x256xf32>, vector<32x256xf32> -> vector<32x256xf32>
    %c0_6 = arith.constant 0 : index
    %c0_7 = arith.constant 0 : index
    %7 = vector.load %arg2[%c0_6, %c0_7] : memref<32x1xf32, #tpu.memory_space<vmem>>, vector<32x1xf32>
    %8 = vector.broadcast %7 : vector<32x1xf32> to vector<32x256xf32>
    %9 = arith.addf %6, %8 : vector<32x256xf32>
    %c0_8 = arith.constant 0 : index
    %c0_9 = arith.constant 0 : index
    %c0_10 = arith.constant 0 : index
    %c0_11 = arith.constant 0 : index
    %10 = vector.load %arg3[%c0_8, %c0_9, %c0_10, %c0_11] : memref<2x3x32x96xf32, #tpu.memory_space<vmem>>, vector<1x1x32x96xf32>
    %11 = vector.shape_cast %10 : vector<1x1x32x96xf32> to vector<32x96xf32>
    %c0_12 = arith.constant 0 : index
    %c0_13 = arith.constant 0 : index
    %c0_14 = arith.constant 0 : index
    %c0_15 = arith.constant 0 : index
    %12 = vector.load %arg4[%c0_12, %c0_13, %c0_14, %c0_15] : memref<2x3x32x1xf32, #tpu.memory_space<vmem>>, vector<1x1x32x1xf32>
    %13 = vector.shape_cast %12 : vector<1x1x32x1xf32> to vector<32x1xf32>
    %c32 = arith.constant 32 : index
    %c0_16 = arith.constant 0 : index
    %14 = vector.load %arg8[%c32, %c0_16] : memref<96x256xf32, #tpu.memory_space<vmem>>, vector<32x256xf32>
    tpu.vector_store %arg8[%c32, %c0_16], %9 {strides = array<i32>} : memref<96x256xf32, #tpu.memory_space<vmem>>, vector<32x256xf32>,
    %cst_17 = arith.constant 0.000000e+00 : f32
    %15 = vector.broadcast %cst_17 : f32 to vector<32x1xf32>
    %c0_18 = arith.constant 0 : index
    %c0_19 = arith.constant 0 : index
    %16 = vector.load %arg8[%c0_18, %c0_19] : memref<96x256xf32, #tpu.memory_space<vmem>>, vector<32x1xf32>
    tpu.vector_store %arg8[%c0_18, %c0_19], %15 {strides = array<i32>} : memref<96x256xf32, #tpu.memory_space<vmem>>, vector<32x1xf32>,
    %17 = vector.extract_strided_slice %9 {offsets = [0, 0], sizes = [32, 127], strides = [1, 1]} : vector<32x256xf32> to vector<32x127xf32>
    %c0_20 = arith.constant 0 : index
    %c1_21 = arith.constant 1 : index
    %18 = vector.load %arg8[%c0_20, %c1_21] : memref<96x256xf32, #tpu.memory_space<vmem>>, vector<32x127xf32>
    tpu.vector_store %arg8[%c0_20, %c1_21], %17 {strides = array<i32>} : memref<96x256xf32, #tpu.memory_space<vmem>>, vector<32x127xf32>,
    %19 = vector.extract_strided_slice %9 {offsets = [0, 1], sizes = [32, 127], strides = [1, 1]} : vector<32x256xf32> to vector<32x127xf32>
    %c64 = arith.constant 64 : index
    %c0_22 = arith.constant 0 : index
    %20 = vector.load %arg8[%c64, %c0_22] : memref<96x256xf32, #tpu.memory_space<vmem>>, vector<32x127xf32>
    tpu.vector_store %arg8[%c64, %c0_22], %19 {strides = array<i32>} : memref<96x256xf32, #tpu.memory_space<vmem>>, vector<32x127xf32>,
    %cst_23 = arith.constant 0.000000e+00 : f32
    %21 = vector.broadcast %cst_23 : f32 to vector<32x1xf32>
    %c64_24 = arith.constant 64 : index
    %c127 = arith.constant 127 : index
    %22 = vector.load %arg8[%c64_24, %c127] : memref<96x256xf32, #tpu.memory_space<vmem>>, vector<32x1xf32>
    tpu.vector_store %arg8[%c64_24, %c127], %21 {strides = array<i32>} : memref<96x256xf32, #tpu.memory_space<vmem>>, vector<32x1xf32>,
    %cst_25 = arith.constant 0.000000e+00 : f32
    %23 = vector.broadcast %cst_25 : f32 to vector<32x1xf32>
    %c0_26 = arith.constant 0 : index
    %c128 = arith.constant 128 : index
    %24 = vector.load %arg8[%c0_26, %c128] : memref<96x256xf32, #tpu.memory_space<vmem>>, vector<32x1xf32>
    tpu.vector_store %arg8[%c0_26, %c128], %23 {strides = array<i32>} : memref<96x256xf32, #tpu.memory_space<vmem>>, vector<32x1xf32>,
    %25 = vector.extract_strided_slice %9 {offsets = [0, 128], sizes = [32, 127], strides = [1, 1]} : vector<32x256xf32> to vector<32x127xf32>
    %c0_27 = arith.constant 0 : index
    %c129 = arith.constant 129 : index
    %26 = vector.load %arg8[%c0_27, %c129] : memref<96x256xf32, #tpu.memory_space<vmem>>, vector<32x127xf32>
    tpu.vector_store %arg8[%c0_27, %c129], %25 {strides = array<i32>} : memref<96x256xf32, #tpu.memory_space<vmem>>, vector<32x127xf32>,
    %27 = vector.extract_strided_slice %9 {offsets = [0, 129], sizes = [32, 127], strides = [1, 1]} : vector<32x256xf32> to vector<32x127xf32>
    %c64_28 = arith.constant 64 : index
    %c128_29 = arith.constant 128 : index
    %28 = vector.load %arg8[%c64_28, %c128_29] : memref<96x256xf32, #tpu.memory_space<vmem>>, vector<32x127xf32>
    tpu.vector_store %arg8[%c64_28, %c128_29], %27 {strides = array<i32>} : memref<96x256xf32, #tpu.memory_space<vmem>>, vector<32x127xf32>,
    %cst_30 = arith.constant 0.000000e+00 : f32
    %29 = vector.broadcast %cst_30 : f32 to vector<32x1xf32>
    %c64_31 = arith.constant 64 : index
    %c255 = arith.constant 255 : index
    %30 = vector.load %arg8[%c64_31, %c255] : memref<96x256xf32, #tpu.memory_space<vmem>>, vector<32x1xf32>
    tpu.vector_store %arg8[%c64_31, %c255], %29 {strides = array<i32>} : memref<96x256xf32, #tpu.memory_space<vmem>>, vector<32x1xf32>,
    %c0_32 = arith.constant 0 : index
    %c0_33 = arith.constant 0 : index
    %31 = vector.load %arg8[%c0_32, %c0_33] : memref<96x256xf32, #tpu.memory_space<vmem>>, vector<96x256xf32>
    %cst_34 = arith.constant dense<0.000000e+00> : vector<32x256xf32>
    %32 = tpu.matmul %11, %31, %cst_34 {dimension_numbers = #tpu.dot_dimension_numbers<[1], [0], [0], [1], [0, 0, 1, 1], [], []>} : vector<32x96xf32>, vector<96x256xf32>, vector<32x256xf32> -> vector<32x256xf32>
    %33 = vector.broadcast %13 : vector<32x1xf32> to vector<32x256xf32>
    %34 = arith.addf %32, %33 : vector<32x256xf32>
    %cst_35 = arith.constant 0.000000e+00 : f32
    %35 = vector.broadcast %cst_35 : f32 to vector<32x256xf32>
    %36 = arith.maximumf %34, %35 : vector<32x256xf32>
    %37 = arith.addf %36, %9 : vector<32x256xf32>
    %c0_36 = arith.constant 0 : index
    %c1_37 = arith.constant 1 : index
    %c0_38 = arith.constant 0 : index
    %c0_39 = arith.constant 0 : index
    %38 = vector.load %arg3[%c0_36, %c1_37, %c0_38, %c0_39] : memref<2x3x32x96xf32, #tpu.memory_space<vmem>>, vector<1x1x32x96xf32>
    %39 = vector.shape_cast %38 : vector<1x1x32x96xf32> to vector<32x96xf32>
    %c0_40 = arith.constant 0 : index
    %c1_41 = arith.constant 1 : index
    %c0_42 = arith.constant 0 : index
    %c0_43 = arith.constant 0 : index
    %40 = vector.load %arg4[%c0_40, %c1_41, %c0_42, %c0_43] : memref<2x3x32x1xf32, #tpu.memory_space<vmem>>, vector<1x1x32x1xf32>
    %41 = vector.shape_cast %40 : vector<1x1x32x1xf32> to vector<32x1xf32>
    %c32_44 = arith.constant 32 : index
    %c0_45 = arith.constant 0 : index
    %42 = vector.load %arg8[%c32_44, %c0_45] : memref<96x256xf32, #tpu.memory_space<vmem>>, vector<32x256xf32>
    tpu.vector_store %arg8[%c32_44, %c0_45], %37 {strides = array<i32>} : memref<96x256xf32, #tpu.memory_space<vmem>>, vector<32x256xf32>,
    %cst_46 = arith.constant 0.000000e+00 : f32
    %43 = vector.broadcast %cst_46 : f32 to vector<32x2xf32>
    %c0_47 = arith.constant 0 : index
    %c0_48 = arith.constant 0 : index
    %44 = vector.load %arg8[%c0_47, %c0_48] : memref<96x256xf32, #tpu.memory_space<vmem>>, vector<32x2xf32>
    tpu.vector_store %arg8[%c0_47, %c0_48], %43 {strides = array<i32>} : memref<96x256xf32, #tpu.memory_space<vmem>>, vector<32x2xf32>,
    %45 = vector.extract_strided_slice %37 {offsets = [0, 0], sizes = [32, 126], strides = [1, 1]} : vector<32x256xf32> to vector<32x126xf32>
    %c0_49 = arith.constant 0 : index
    %c2 = arith.constant 2 : index
    %46 = vector.load %arg8[%c0_49, %c2] : memref<96x256xf32, #tpu.memory_space<vmem>>, vector<32x126xf32>
    tpu.vector_store %arg8[%c0_49, %c2], %45 {strides = array<i32>} : memref<96x256xf32, #tpu.memory_space<vmem>>, vector<32x126xf32>,
    %47 = vector.extract_strided_slice %37 {offsets = [0, 2], sizes = [32, 126], strides = [1, 1]} : vector<32x256xf32> to vector<32x126xf32>
    %c64_50 = arith.constant 64 : index
    %c0_51 = arith.constant 0 : index
    %48 = vector.load %arg8[%c64_50, %c0_51] : memref<96x256xf32, #tpu.memory_space<vmem>>, vector<32x126xf32>
    tpu.vector_store %arg8[%c64_50, %c0_51], %47 {strides = array<i32>} : memref<96x256xf32, #tpu.memory_space<vmem>>, vector<32x126xf32>,
    %cst_52 = arith.constant 0.000000e+00 : f32
    %49 = vector.broadcast %cst_52 : f32 to vector<32x2xf32>
    %c64_53 = arith.constant 64 : index
    %c126 = arith.constant 126 : index
    %50 = vector.load %arg8[%c64_53, %c126] : memref<96x256xf32, #tpu.memory_space<vmem>>, vector<32x2xf32>
    tpu.vector_store %arg8[%c64_53, %c126], %49 {strides = array<i32>} : memref<96x256xf32, #tpu.memory_space<vmem>>, vector<32x2xf32>,
    %cst_54 = arith.constant 0.000000e+00 : f32
    %51 = vector.broadcast %cst_54 : f32 to vector<32x2xf32>
    %c0_55 = arith.constant 0 : index
    %c128_56 = arith.constant 128 : index
    %52 = vector.load %arg8[%c0_55, %c128_56] : memref<96x256xf32, #tpu.memory_space<vmem>>, vector<32x2xf32>
    tpu.vector_store %arg8[%c0_55, %c128_56], %51 {strides = array<i32>} : memref<96x256xf32, #tpu.memory_space<vmem>>, vector<32x2xf32>,
    %53 = vector.extract_strided_slice %37 {offsets = [0, 128], sizes = [32, 126], strides = [1, 1]} : vector<32x256xf32> to vector<32x126xf32>
    %c0_57 = arith.constant 0 : index
    %c130 = arith.constant 130 : index
    %54 = vector.load %arg8[%c0_57, %c130] : memref<96x256xf32, #tpu.memory_space<vmem>>, vector<32x126xf32>
    tpu.vector_store %arg8[%c0_57, %c130], %53 {strides = array<i32>} : memref<96x256xf32, #tpu.memory_space<vmem>>, vector<32x126xf32>,
    %55 = vector.extract_strided_slice %37 {offsets = [0, 130], sizes = [32, 126], strides = [1, 1]} : vector<32x256xf32> to vector<32x126xf32>
    %c64_58 = arith.constant 64 : index
    %c128_59 = arith.constant 128 : index
    %56 = vector.load %arg8[%c64_58, %c128_59] : memref<96x256xf32, #tpu.memory_space<vmem>>, vector<32x126xf32>
    tpu.vector_store %arg8[%c64_58, %c128_59], %55 {strides = array<i32>} : memref<96x256xf32, #tpu.memory_space<vmem>>, vector<32x126xf32>,
    %cst_60 = arith.constant 0.000000e+00 : f32
    %57 = vector.broadcast %cst_60 : f32 to vector<32x2xf32>
    %c64_61 = arith.constant 64 : index
    %c254 = arith.constant 254 : index
    %58 = vector.load %arg8[%c64_61, %c254] : memref<96x256xf32, #tpu.memory_space<vmem>>, vector<32x2xf32>
    tpu.vector_store %arg8[%c64_61, %c254], %57 {strides = array<i32>} : memref<96x256xf32, #tpu.memory_space<vmem>>, vector<32x2xf32>,
    %c0_62 = arith.constant 0 : index
    %c0_63 = arith.constant 0 : index
    %59 = vector.load %arg8[%c0_62, %c0_63] : memref<96x256xf32, #tpu.memory_space<vmem>>, vector<96x256xf32>
    %cst_64 = arith.constant dense<0.000000e+00> : vector<32x256xf32>
    %60 = tpu.matmul %39, %59, %cst_64 {dimension_numbers = #tpu.dot_dimension_numbers<[1], [0], [0], [1], [0, 0, 1, 1], [], []>} : vector<32x96xf32>, vector<96x256xf32>, vector<32x256xf32> -> vector<32x256xf32>
    %61 = vector.broadcast %41 : vector<32x1xf32> to vector<32x256xf32>
    %62 = arith.addf %60, %61 : vector<32x256xf32>
    %cst_65 = arith.constant 0.000000e+00 : f32
    %63 = vector.broadcast %cst_65 : f32 to vector<32x256xf32>
    %64 = arith.maximumf %62, %63 : vector<32x256xf32>
    %65 = arith.addf %64, %37 : vector<32x256xf32>
    %c0_66 = arith.constant 0 : index
    %c2_67 = arith.constant 2 : index
    %c0_68 = arith.constant 0 : index
    %c0_69 = arith.constant 0 : index
    %66 = vector.load %arg3[%c0_66, %c2_67, %c0_68, %c0_69] : memref<2x3x32x96xf32, #tpu.memory_space<vmem>>, vector<1x1x32x96xf32>
    %67 = vector.shape_cast %66 : vector<1x1x32x96xf32> to vector<32x96xf32>
    %c0_70 = arith.constant 0 : index
    %c2_71 = arith.constant 2 : index
    %c0_72 = arith.constant 0 : index
    %c0_73 = arith.constant 0 : index
    %68 = vector.load %arg4[%c0_70, %c2_71, %c0_72, %c0_73] : memref<2x3x32x1xf32, #tpu.memory_space<vmem>>, vector<1x1x32x1xf32>
    %69 = vector.shape_cast %68 : vector<1x1x32x1xf32> to vector<32x1xf32>
    %c32_74 = arith.constant 32 : index
    %c0_75 = arith.constant 0 : index
    %70 = vector.load %arg8[%c32_74, %c0_75] : memref<96x256xf32, #tpu.memory_space<vmem>>, vector<32x256xf32>
    tpu.vector_store %arg8[%c32_74, %c0_75], %65 {strides = array<i32>} : memref<96x256xf32, #tpu.memory_space<vmem>>, vector<32x256xf32>,
    %cst_76 = arith.constant 0.000000e+00 : f32
    %71 = vector.broadcast %cst_76 : f32 to vector<32x4xf32>
    %c0_77 = arith.constant 0 : index
    %c0_78 = arith.constant 0 : index
    %72 = vector.load %arg8[%c0_77, %c0_78] : memref<96x256xf32, #tpu.memory_space<vmem>>, vector<32x4xf32>
    tpu.vector_store %arg8[%c0_77, %c0_78], %71 {strides = array<i32>} : memref<96x256xf32, #tpu.memory_space<vmem>>, vector<32x4xf32>,
    %73 = vector.extract_strided_slice %65 {offsets = [0, 0], sizes = [32, 124], strides = [1, 1]} : vector<32x256xf32> to vector<32x124xf32>
    %c0_79 = arith.constant 0 : index
    %c4 = arith.constant 4 : index
    %74 = vector.load %arg8[%c0_79, %c4] : memref<96x256xf32, #tpu.memory_space<vmem>>, vector<32x124xf32>
    tpu.vector_store %arg8[%c0_79, %c4], %73 {strides = array<i32>} : memref<96x256xf32, #tpu.memory_space<vmem>>, vector<32x124xf32>,
    %75 = vector.extract_strided_slice %65 {offsets = [0, 4], sizes = [32, 124], strides = [1, 1]} : vector<32x256xf32> to vector<32x124xf32>
    %c64_80 = arith.constant 64 : index
    %c0_81 = arith.constant 0 : index
    %76 = vector.load %arg8[%c64_80, %c0_81] : memref<96x256xf32, #tpu.memory_space<vmem>>, vector<32x124xf32>
    tpu.vector_store %arg8[%c64_80, %c0_81], %75 {strides = array<i32>} : memref<96x256xf32, #tpu.memory_space<vmem>>, vector<32x124xf32>,
    %cst_82 = arith.constant 0.000000e+00 : f32
    %77 = vector.broadcast %cst_82 : f32 to vector<32x4xf32>
    %c64_83 = arith.constant 64 : index
    %c124 = arith.constant 124 : index
    %78 = vector.load %arg8[%c64_83, %c124] : memref<96x256xf32, #tpu.memory_space<vmem>>, vector<32x4xf32>
    tpu.vector_store %arg8[%c64_83, %c124], %77 {strides = array<i32>} : memref<96x256xf32, #tpu.memory_space<vmem>>, vector<32x4xf32>,
    %cst_84 = arith.constant 0.000000e+00 : f32
    %79 = vector.broadcast %cst_84 : f32 to vector<32x4xf32>
    %c0_85 = arith.constant 0 : index
    %c128_86 = arith.constant 128 : index
    %80 = vector.load %arg8[%c0_85, %c128_86] : memref<96x256xf32, #tpu.memory_space<vmem>>, vector<32x4xf32>
    tpu.vector_store %arg8[%c0_85, %c128_86], %79 {strides = array<i32>} : memref<96x256xf32, #tpu.memory_space<vmem>>, vector<32x4xf32>,
    %81 = vector.extract_strided_slice %65 {offsets = [0, 128], sizes = [32, 124], strides = [1, 1]} : vector<32x256xf32> to vector<32x124xf32>
    %c0_87 = arith.constant 0 : index
    %c132 = arith.constant 132 : index
    %82 = vector.load %arg8[%c0_87, %c132] : memref<96x256xf32, #tpu.memory_space<vmem>>, vector<32x124xf32>
    tpu.vector_store %arg8[%c0_87, %c132], %81 {strides = array<i32>} : memref<96x256xf32, #tpu.memory_space<vmem>>, vector<32x124xf32>,
    %83 = vector.extract_strided_slice %65 {offsets = [0, 132], sizes = [32, 124], strides = [1, 1]} : vector<32x256xf32> to vector<32x124xf32>
    %c64_88 = arith.constant 64 : index
    %c128_89 = arith.constant 128 : index
    %84 = vector.load %arg8[%c64_88, %c128_89] : memref<96x256xf32, #tpu.memory_space<vmem>>, vector<32x124xf32>
    tpu.vector_store %arg8[%c64_88, %c128_89], %83 {strides = array<i32>} : memref<96x256xf32, #tpu.memory_space<vmem>>, vector<32x124xf32>,
    %cst_90 = arith.constant 0.000000e+00 : f32
    %85 = vector.broadcast %cst_90 : f32 to vector<32x4xf32>
    %c64_91 = arith.constant 64 : index
    %c252 = arith.constant 252 : index
    %86 = vector.load %arg8[%c64_91, %c252] : memref<96x256xf32, #tpu.memory_space<vmem>>, vector<32x4xf32>
    tpu.vector_store %arg8[%c64_91, %c252], %85 {strides = array<i32>} : memref<96x256xf32, #tpu.memory_space<vmem>>, vector<32x4xf32>,
    %c0_92 = arith.constant 0 : index
    %c0_93 = arith.constant 0 : index
    %87 = vector.load %arg8[%c0_92, %c0_93] : memref<96x256xf32, #tpu.memory_space<vmem>>, vector<96x256xf32>
    %cst_94 = arith.constant dense<0.000000e+00> : vector<32x256xf32>
    %88 = tpu.matmul %67, %87, %cst_94 {dimension_numbers = #tpu.dot_dimension_numbers<[1], [0], [0], [1], [0, 0, 1, 1], [], []>} : vector<32x96xf32>, vector<96x256xf32>, vector<32x256xf32> -> vector<32x256xf32>
    %89 = vector.broadcast %69 : vector<32x1xf32> to vector<32x256xf32>
    %90 = arith.addf %88, %89 : vector<32x256xf32>
    %cst_95 = arith.constant 0.000000e+00 : f32
    %91 = vector.broadcast %cst_95 : f32 to vector<32x256xf32>
    %92 = arith.maximumf %90, %91 : vector<32x256xf32>
    %93 = arith.addf %92, %65 : vector<32x256xf32>
    %c1_96 = arith.constant 1 : index
    %c0_97 = arith.constant 0 : index
    %c0_98 = arith.constant 0 : index
    %c0_99 = arith.constant 0 : index
    %94 = vector.load %arg3[%c1_96, %c0_97, %c0_98, %c0_99] : memref<2x3x32x96xf32, #tpu.memory_space<vmem>>, vector<1x1x32x96xf32>
    %95 = vector.shape_cast %94 : vector<1x1x32x96xf32> to vector<32x96xf32>
    %c1_100 = arith.constant 1 : index
    %c0_101 = arith.constant 0 : index
    %c0_102 = arith.constant 0 : index
    %c0_103 = arith.constant 0 : index
    %96 = vector.load %arg4[%c1_100, %c0_101, %c0_102, %c0_103] : memref<2x3x32x1xf32, #tpu.memory_space<vmem>>, vector<1x1x32x1xf32>
    %97 = vector.shape_cast %96 : vector<1x1x32x1xf32> to vector<32x1xf32>
    %c32_104 = arith.constant 32 : index
    %c0_105 = arith.constant 0 : index
    %98 = vector.load %arg8[%c32_104, %c0_105] : memref<96x256xf32, #tpu.memory_space<vmem>>, vector<32x256xf32>
    tpu.vector_store %arg8[%c32_104, %c0_105], %93 {strides = array<i32>} : memref<96x256xf32, #tpu.memory_space<vmem>>, vector<32x256xf32>,
    %cst_106 = arith.constant 0.000000e+00 : f32
    %99 = vector.broadcast %cst_106 : f32 to vector<32x1xf32>
    %c0_107 = arith.constant 0 : index
    %c0_108 = arith.constant 0 : index
    %100 = vector.load %arg8[%c0_107, %c0_108] : memref<96x256xf32, #tpu.memory_space<vmem>>, vector<32x1xf32>
    tpu.vector_store %arg8[%c0_107, %c0_108], %99 {strides = array<i32>} : memref<96x256xf32, #tpu.memory_space<vmem>>, vector<32x1xf32>,
    %101 = vector.extract_strided_slice %93 {offsets = [0, 0], sizes = [32, 127], strides = [1, 1]} : vector<32x256xf32> to vector<32x127xf32>
    %c0_109 = arith.constant 0 : index
    %c1_110 = arith.constant 1 : index
    %102 = vector.load %arg8[%c0_109, %c1_110] : memref<96x256xf32, #tpu.memory_space<vmem>>, vector<32x127xf32>
    tpu.vector_store %arg8[%c0_109, %c1_110], %101 {strides = array<i32>} : memref<96x256xf32, #tpu.memory_space<vmem>>, vector<32x127xf32>,
    %103 = vector.extract_strided_slice %93 {offsets = [0, 1], sizes = [32, 127], strides = [1, 1]} : vector<32x256xf32> to vector<32x127xf32>
    %c64_111 = arith.constant 64 : index
    %c0_112 = arith.constant 0 : index
    %104 = vector.load %arg8[%c64_111, %c0_112] : memref<96x256xf32, #tpu.memory_space<vmem>>, vector<32x127xf32>
    tpu.vector_store %arg8[%c64_111, %c0_112], %103 {strides = array<i32>} : memref<96x256xf32, #tpu.memory_space<vmem>>, vector<32x127xf32>,
    %cst_113 = arith.constant 0.000000e+00 : f32
    %105 = vector.broadcast %cst_113 : f32 to vector<32x1xf32>
    %c64_114 = arith.constant 64 : index
    %c127_115 = arith.constant 127 : index
    %106 = vector.load %arg8[%c64_114, %c127_115] : memref<96x256xf32, #tpu.memory_space<vmem>>, vector<32x1xf32>
    tpu.vector_store %arg8[%c64_114, %c127_115], %105 {strides = array<i32>} : memref<96x256xf32, #tpu.memory_space<vmem>>, vector<32x1xf32>,
    %cst_116 = arith.constant 0.000000e+00 : f32
    %107 = vector.broadcast %cst_116 : f32 to vector<32x1xf32>
    %c0_117 = arith.constant 0 : index
    %c128_118 = arith.constant 128 : index
    %108 = vector.load %arg8[%c0_117, %c128_118] : memref<96x256xf32, #tpu.memory_space<vmem>>, vector<32x1xf32>
    tpu.vector_store %arg8[%c0_117, %c128_118], %107 {strides = array<i32>} : memref<96x256xf32, #tpu.memory_space<vmem>>, vector<32x1xf32>,
    %109 = vector.extract_strided_slice %93 {offsets = [0, 128], sizes = [32, 127], strides = [1, 1]} : vector<32x256xf32> to vector<32x127xf32>
    %c0_119 = arith.constant 0 : index
    %c129_120 = arith.constant 129 : index
    %110 = vector.load %arg8[%c0_119, %c129_120] : memref<96x256xf32, #tpu.memory_space<vmem>>, vector<32x127xf32>
    tpu.vector_store %arg8[%c0_119, %c129_120], %109 {strides = array<i32>} : memref<96x256xf32, #tpu.memory_space<vmem>>, vector<32x127xf32>,
    %111 = vector.extract_strided_slice %93 {offsets = [0, 129], sizes = [32, 127], strides = [1, 1]} : vector<32x256xf32> to vector<32x127xf32>
    %c64_121 = arith.constant 64 : index
    %c128_122 = arith.constant 128 : index
    %112 = vector.load %arg8[%c64_121, %c128_122] : memref<96x256xf32, #tpu.memory_space<vmem>>, vector<32x127xf32>
    tpu.vector_store %arg8[%c64_121, %c128_122], %111 {strides = array<i32>} : memref<96x256xf32, #tpu.memory_space<vmem>>, vector<32x127xf32>,
    %cst_123 = arith.constant 0.000000e+00 : f32
    %113 = vector.broadcast %cst_123 : f32 to vector<32x1xf32>
    %c64_124 = arith.constant 64 : index
    %c255_125 = arith.constant 255 : index
    %114 = vector.load %arg8[%c64_124, %c255_125] : memref<96x256xf32, #tpu.memory_space<vmem>>, vector<32x1xf32>
    tpu.vector_store %arg8[%c64_124, %c255_125], %113 {strides = array<i32>} : memref<96x256xf32, #tpu.memory_space<vmem>>, vector<32x1xf32>,
    %c0_126 = arith.constant 0 : index
    %c0_127 = arith.constant 0 : index
    %115 = vector.load %arg8[%c0_126, %c0_127] : memref<96x256xf32, #tpu.memory_space<vmem>>, vector<96x256xf32>
    %cst_128 = arith.constant dense<0.000000e+00> : vector<32x256xf32>
    %116 = tpu.matmul %95, %115, %cst_128 {dimension_numbers = #tpu.dot_dimension_numbers<[1], [0], [0], [1], [0, 0, 1, 1], [], []>} : vector<32x96xf32>, vector<96x256xf32>, vector<32x256xf32> -> vector<32x256xf32>
    %117 = vector.broadcast %97 : vector<32x1xf32> to vector<32x256xf32>
    %118 = arith.addf %116, %117 : vector<32x256xf32>
    %cst_129 = arith.constant 0.000000e+00 : f32
    %119 = vector.broadcast %cst_129 : f32 to vector<32x256xf32>
    %120 = arith.maximumf %118, %119 : vector<32x256xf32>
    %121 = arith.addf %120, %93 : vector<32x256xf32>
    %c1_130 = arith.constant 1 : index
    %c1_131 = arith.constant 1 : index
    %c0_132 = arith.constant 0 : index
    %c0_133 = arith.constant 0 : index
    %122 = vector.load %arg3[%c1_130, %c1_131, %c0_132, %c0_133] : memref<2x3x32x96xf32, #tpu.memory_space<vmem>>, vector<1x1x32x96xf32>
    %123 = vector.shape_cast %122 : vector<1x1x32x96xf32> to vector<32x96xf32>
    %c1_134 = arith.constant 1 : index
    %c1_135 = arith.constant 1 : index
    %c0_136 = arith.constant 0 : index
    %c0_137 = arith.constant 0 : index
    %124 = vector.load %arg4[%c1_134, %c1_135, %c0_136, %c0_137] : memref<2x3x32x1xf32, #tpu.memory_space<vmem>>, vector<1x1x32x1xf32>
    %125 = vector.shape_cast %124 : vector<1x1x32x1xf32> to vector<32x1xf32>
    %c32_138 = arith.constant 32 : index
    %c0_139 = arith.constant 0 : index
    %126 = vector.load %arg8[%c32_138, %c0_139] : memref<96x256xf32, #tpu.memory_space<vmem>>, vector<32x256xf32>
    tpu.vector_store %arg8[%c32_138, %c0_139], %121 {strides = array<i32>} : memref<96x256xf32, #tpu.memory_space<vmem>>, vector<32x256xf32>,
    %cst_140 = arith.constant 0.000000e+00 : f32
    %127 = vector.broadcast %cst_140 : f32 to vector<32x2xf32>
    %c0_141 = arith.constant 0 : index
    %c0_142 = arith.constant 0 : index
    %128 = vector.load %arg8[%c0_141, %c0_142] : memref<96x256xf32, #tpu.memory_space<vmem>>, vector<32x2xf32>
    tpu.vector_store %arg8[%c0_141, %c0_142], %127 {strides = array<i32>} : memref<96x256xf32, #tpu.memory_space<vmem>>, vector<32x2xf32>,
    %129 = vector.extract_strided_slice %121 {offsets = [0, 0], sizes = [32, 126], strides = [1, 1]} : vector<32x256xf32> to vector<32x126xf32>
    %c0_143 = arith.constant 0 : index
    %c2_144 = arith.constant 2 : index
    %130 = vector.load %arg8[%c0_143, %c2_144] : memref<96x256xf32, #tpu.memory_space<vmem>>, vector<32x126xf32>
    tpu.vector_store %arg8[%c0_143, %c2_144], %129 {strides = array<i32>} : memref<96x256xf32, #tpu.memory_space<vmem>>, vector<32x126xf32>,
    %131 = vector.extract_strided_slice %121 {offsets = [0, 2], sizes = [32, 126], strides = [1, 1]} : vector<32x256xf32> to vector<32x126xf32>
    %c64_145 = arith.constant 64 : index
    %c0_146 = arith.constant 0 : index
    %132 = vector.load %arg8[%c64_145, %c0_146] : memref<96x256xf32, #tpu.memory_space<vmem>>, vector<32x126xf32>
    tpu.vector_store %arg8[%c64_145, %c0_146], %131 {strides = array<i32>} : memref<96x256xf32, #tpu.memory_space<vmem>>, vector<32x126xf32>,
    %cst_147 = arith.constant 0.000000e+00 : f32
    %133 = vector.broadcast %cst_147 : f32 to vector<32x2xf32>
    %c64_148 = arith.constant 64 : index
    %c126_149 = arith.constant 126 : index
    %134 = vector.load %arg8[%c64_148, %c126_149] : memref<96x256xf32, #tpu.memory_space<vmem>>, vector<32x2xf32>
    tpu.vector_store %arg8[%c64_148, %c126_149], %133 {strides = array<i32>} : memref<96x256xf32, #tpu.memory_space<vmem>>, vector<32x2xf32>,
    %cst_150 = arith.constant 0.000000e+00 : f32
    %135 = vector.broadcast %cst_150 : f32 to vector<32x2xf32>
    %c0_151 = arith.constant 0 : index
    %c128_152 = arith.constant 128 : index
    %136 = vector.load %arg8[%c0_151, %c128_152] : memref<96x256xf32, #tpu.memory_space<vmem>>, vector<32x2xf32>
    tpu.vector_store %arg8[%c0_151, %c128_152], %135 {strides = array<i32>} : memref<96x256xf32, #tpu.memory_space<vmem>>, vector<32x2xf32>,
    %137 = vector.extract_strided_slice %121 {offsets = [0, 128], sizes = [32, 126], strides = [1, 1]} : vector<32x256xf32> to vector<32x126xf32>
    %c0_153 = arith.constant 0 : index
    %c130_154 = arith.constant 130 : index
    %138 = vector.load %arg8[%c0_153, %c130_154] : memref<96x256xf32, #tpu.memory_space<vmem>>, vector<32x126xf32>
    tpu.vector_store %arg8[%c0_153, %c130_154], %137 {strides = array<i32>} : memref<96x256xf32, #tpu.memory_space<vmem>>, vector<32x126xf32>,
    %139 = vector.extract_strided_slice %121 {offsets = [0, 130], sizes = [32, 126], strides = [1, 1]} : vector<32x256xf32> to vector<32x126xf32>
    %c64_155 = arith.constant 64 : index
    %c128_156 = arith.constant 128 : index
    %140 = vector.load %arg8[%c64_155, %c128_156] : memref<96x256xf32, #tpu.memory_space<vmem>>, vector<32x126xf32>
    tpu.vector_store %arg8[%c64_155, %c128_156], %139 {strides = array<i32>} : memref<96x256xf32, #tpu.memory_space<vmem>>, vector<32x126xf32>,
    %cst_157 = arith.constant 0.000000e+00 : f32
    %141 = vector.broadcast %cst_157 : f32 to vector<32x2xf32>
    %c64_158 = arith.constant 64 : index
    %c254_159 = arith.constant 254 : index
    %142 = vector.load %arg8[%c64_158, %c254_159] : memref<96x256xf32, #tpu.memory_space<vmem>>, vector<32x2xf32>
    tpu.vector_store %arg8[%c64_158, %c254_159], %141 {strides = array<i32>} : memref<96x256xf32, #tpu.memory_space<vmem>>, vector<32x2xf32>,
    %c0_160 = arith.constant 0 : index
    %c0_161 = arith.constant 0 : index
    %143 = vector.load %arg8[%c0_160, %c0_161] : memref<96x256xf32, #tpu.memory_space<vmem>>, vector<96x256xf32>
    %cst_162 = arith.constant dense<0.000000e+00> : vector<32x256xf32>
    %144 = tpu.matmul %123, %143, %cst_162 {dimension_numbers = #tpu.dot_dimension_numbers<[1], [0], [0], [1], [0, 0, 1, 1], [], []>} : vector<32x96xf32>, vector<96x256xf32>, vector<32x256xf32> -> vector<32x256xf32>
    %145 = vector.broadcast %125 : vector<32x1xf32> to vector<32x256xf32>
    %146 = arith.addf %144, %145 : vector<32x256xf32>
    %cst_163 = arith.constant 0.000000e+00 : f32
    %147 = vector.broadcast %cst_163 : f32 to vector<32x256xf32>
    %148 = arith.maximumf %146, %147 : vector<32x256xf32>
    %149 = arith.addf %148, %121 : vector<32x256xf32>
    %c1_164 = arith.constant 1 : index
    %c2_165 = arith.constant 2 : index
    %c0_166 = arith.constant 0 : index
    %c0_167 = arith.constant 0 : index
    %150 = vector.load %arg3[%c1_164, %c2_165, %c0_166, %c0_167] : memref<2x3x32x96xf32, #tpu.memory_space<vmem>>, vector<1x1x32x96xf32>
    %151 = vector.shape_cast %150 : vector<1x1x32x96xf32> to vector<32x96xf32>
    %c1_168 = arith.constant 1 : index
    %c2_169 = arith.constant 2 : index
    %c0_170 = arith.constant 0 : index
    %c0_171 = arith.constant 0 : index
    %152 = vector.load %arg4[%c1_168, %c2_169, %c0_170, %c0_171] : memref<2x3x32x1xf32, #tpu.memory_space<vmem>>, vector<1x1x32x1xf32>
    %153 = vector.shape_cast %152 : vector<1x1x32x1xf32> to vector<32x1xf32>
    %c32_172 = arith.constant 32 : index
    %c0_173 = arith.constant 0 : index
    %154 = vector.load %arg8[%c32_172, %c0_173] : memref<96x256xf32, #tpu.memory_space<vmem>>, vector<32x256xf32>
    tpu.vector_store %arg8[%c32_172, %c0_173], %149 {strides = array<i32>} : memref<96x256xf32, #tpu.memory_space<vmem>>, vector<32x256xf32>,
    %cst_174 = arith.constant 0.000000e+00 : f32
    %155 = vector.broadcast %cst_174 : f32 to vector<32x4xf32>
    %c0_175 = arith.constant 0 : index
    %c0_176 = arith.constant 0 : index
    %156 = vector.load %arg8[%c0_175, %c0_176] : memref<96x256xf32, #tpu.memory_space<vmem>>, vector<32x4xf32>
    tpu.vector_store %arg8[%c0_175, %c0_176], %155 {strides = array<i32>} : memref<96x256xf32, #tpu.memory_space<vmem>>, vector<32x4xf32>,
    %157 = vector.extract_strided_slice %149 {offsets = [0, 0], sizes = [32, 124], strides = [1, 1]} : vector<32x256xf32> to vector<32x124xf32>
    %c0_177 = arith.constant 0 : index
    %c4_178 = arith.constant 4 : index
    %158 = vector.load %arg8[%c0_177, %c4_178] : memref<96x256xf32, #tpu.memory_space<vmem>>, vector<32x124xf32>
    tpu.vector_store %arg8[%c0_177, %c4_178], %157 {strides = array<i32>} : memref<96x256xf32, #tpu.memory_space<vmem>>, vector<32x124xf32>,
    %159 = vector.extract_strided_slice %149 {offsets = [0, 4], sizes = [32, 124], strides = [1, 1]} : vector<32x256xf32> to vector<32x124xf32>
    %c64_179 = arith.constant 64 : index
    %c0_180 = arith.constant 0 : index
    %160 = vector.load %arg8[%c64_179, %c0_180] : memref<96x256xf32, #tpu.memory_space<vmem>>, vector<32x124xf32>
    tpu.vector_store %arg8[%c64_179, %c0_180], %159 {strides = array<i32>} : memref<96x256xf32, #tpu.memory_space<vmem>>, vector<32x124xf32>,
    %cst_181 = arith.constant 0.000000e+00 : f32
    %161 = vector.broadcast %cst_181 : f32 to vector<32x4xf32>
    %c64_182 = arith.constant 64 : index
    %c124_183 = arith.constant 124 : index
    %162 = vector.load %arg8[%c64_182, %c124_183] : memref<96x256xf32, #tpu.memory_space<vmem>>, vector<32x4xf32>
    tpu.vector_store %arg8[%c64_182, %c124_183], %161 {strides = array<i32>} : memref<96x256xf32, #tpu.memory_space<vmem>>, vector<32x4xf32>,
    %cst_184 = arith.constant 0.000000e+00 : f32
    %163 = vector.broadcast %cst_184 : f32 to vector<32x4xf32>
    %c0_185 = arith.constant 0 : index
    %c128_186 = arith.constant 128 : index
    %164 = vector.load %arg8[%c0_185, %c128_186] : memref<96x256xf32, #tpu.memory_space<vmem>>, vector<32x4xf32>
    tpu.vector_store %arg8[%c0_185, %c128_186], %163 {strides = array<i32>} : memref<96x256xf32, #tpu.memory_space<vmem>>, vector<32x4xf32>,
    %165 = vector.extract_strided_slice %149 {offsets = [0, 128], sizes = [32, 124], strides = [1, 1]} : vector<32x256xf32> to vector<32x124xf32>
    %c0_187 = arith.constant 0 : index
    %c132_188 = arith.constant 132 : index
    %166 = vector.load %arg8[%c0_187, %c132_188] : memref<96x256xf32, #tpu.memory_space<vmem>>, vector<32x124xf32>
    tpu.vector_store %arg8[%c0_187, %c132_188], %165 {strides = array<i32>} : memref<96x256xf32, #tpu.memory_space<vmem>>, vector<32x124xf32>,
    %167 = vector.extract_strided_slice %149 {offsets = [0, 132], sizes = [32, 124], strides = [1, 1]} : vector<32x256xf32> to vector<32x124xf32>
    %c64_189 = arith.constant 64 : index
    %c128_190 = arith.constant 128 : index
    %168 = vector.load %arg8[%c64_189, %c128_190] : memref<96x256xf32, #tpu.memory_space<vmem>>, vector<32x124xf32>
    tpu.vector_store %arg8[%c64_189, %c128_190], %167 {strides = array<i32>} : memref<96x256xf32, #tpu.memory_space<vmem>>, vector<32x124xf32>,
    %cst_191 = arith.constant 0.000000e+00 : f32
    %169 = vector.broadcast %cst_191 : f32 to vector<32x4xf32>
    %c64_192 = arith.constant 64 : index
    %c252_193 = arith.constant 252 : index
    %170 = vector.load %arg8[%c64_192, %c252_193] : memref<96x256xf32, #tpu.memory_space<vmem>>, vector<32x4xf32>
    tpu.vector_store %arg8[%c64_192, %c252_193], %169 {strides = array<i32>} : memref<96x256xf32, #tpu.memory_space<vmem>>, vector<32x4xf32>,
    %c0_194 = arith.constant 0 : index
    %c0_195 = arith.constant 0 : index
    %171 = vector.load %arg8[%c0_194, %c0_195] : memref<96x256xf32, #tpu.memory_space<vmem>>, vector<96x256xf32>
    %cst_196 = arith.constant dense<0.000000e+00> : vector<32x256xf32>
    %172 = tpu.matmul %151, %171, %cst_196 {dimension_numbers = #tpu.dot_dimension_numbers<[1], [0], [0], [1], [0, 0, 1, 1], [], []>} : vector<32x96xf32>, vector<96x256xf32>, vector<32x256xf32> -> vector<32x256xf32>
    %173 = vector.broadcast %153 : vector<32x1xf32> to vector<32x256xf32>
    %174 = arith.addf %172, %173 : vector<32x256xf32>
    %cst_197 = arith.constant 0.000000e+00 : f32
    %175 = vector.broadcast %cst_197 : f32 to vector<32x256xf32>
    %176 = arith.maximumf %174, %175 : vector<32x256xf32>
    %177 = arith.addf %176, %149 : vector<32x256xf32>
    %c0_198 = arith.constant 0 : index
    %c0_199 = arith.constant 0 : index
    %178 = vector.load %arg5[%c0_198, %c0_199] : memref<8x32xf32, #tpu.memory_space<vmem>>, vector<8x32xf32>
    %cst_200 = arith.constant dense<0.000000e+00> : vector<8x256xf32>
    %179 = tpu.matmul %178, %177, %cst_200 {dimension_numbers = #tpu.dot_dimension_numbers<[1], [0], [0], [1], [0, 0, 1, 1], [], []>} : vector<8x32xf32>, vector<32x256xf32>, vector<8x256xf32> -> vector<8x256xf32>
    %c0_201 = arith.constant 0 : index
    %c0_202 = arith.constant 0 : index
    %180 = vector.load %arg6[%c0_201, %c0_202] : memref<8x1xf32, #tpu.memory_space<vmem>>, vector<8x1xf32>
    %181 = vector.broadcast %180 : vector<8x1xf32> to vector<8x256xf32>
    %182 = arith.addf %179, %181 : vector<8x256xf32>
    %183 = vector.extract_strided_slice %182 {offsets = [0, 0], sizes = [8, 128], strides = [1, 1]} : vector<8x256xf32> to vector<8x128xf32>
    %c0_203 = arith.constant 0 : index
    %c0_204 = arith.constant 0 : index
    %c0_205 = arith.constant 0 : index
    %184 = vector.load %arg7[%c0_203, %c0_204, %c0_205] : memref<2x8x128xf32, #tpu.memory_space<vmem>>, vector<1x8x128xf32>
    %185 = vector.shape_cast %184 : vector<1x8x128xf32> to vector<8x128xf32>
    %186 = vector.shape_cast %183 : vector<8x128xf32> to vector<1x8x128xf32>
    tpu.vector_store %arg7[%c0_203, %c0_204, %c0_205], %186 {strides = array<i32>} : memref<2x8x128xf32, #tpu.memory_space<vmem>>, vector<1x8x128xf32>,
    %187 = vector.extract_strided_slice %182 {offsets = [0, 128], sizes = [8, 128], strides = [1, 1]} : vector<8x256xf32> to vector<8x128xf32>
    %c1_206 = arith.constant 1 : index
    %c0_207 = arith.constant 0 : index
    %c0_208 = arith.constant 0 : index
    %188 = vector.load %arg7[%c1_206, %c0_207, %c0_208] : memref<2x8x128xf32, #tpu.memory_space<vmem>>, vector<1x8x128xf32>
    %189 = vector.shape_cast %188 : vector<1x8x128xf32> to vector<8x128xf32>
    %190 = vector.shape_cast %187 : vector<8x128xf32> to vector<1x8x128xf32>
    tpu.vector_store %arg7[%c1_206, %c0_207, %c0_208], %190 {strides = array<i32>} : memref<2x8x128xf32, #tpu.memory_space<vmem>>, vector<1x8x128xf32>,
    return
  }
}

</mosaic_0001>

<llo_original>
// kernel: timeinator_forward.1
$region0: #{timeinator_forward.1}
  #allocation0 [shape = 'u32[]', space=smem, size = 0x4, offset = 0x4, fixed_abs, tag = 'smem constant byte address 0x4 - core index']
  #allocation1 [shape = 'u32[144,128]{1,0:T(1,128)}', space=vmem, size = 0x12000, scoped, tag = 'internal scratch']
  #allocation2 [shape = 'f32[96,256]{1,0:T(8,128)}', space=vmem, size = 0x18000, scoped, tag = 'scratch operand']
  %s0 = inlined_call_operand.vmem [shape: f32[2,16,128], index: 0, kind: input, shape index: {}]
  %s1 = inlined_call_operand.vmem [shape: f32[32,16], index: 1, kind: input, shape index: {}]
  %s2 = inlined_call_operand.vmem [shape: f32[32,1], index: 2, kind: input, shape index: {}]
  %s3 = inlined_call_operand.vmem [shape: f32[2,3,32,96], index: 3, kind: input, shape index: {}]
  %s4 = inlined_call_operand.vmem [shape: f32[2,3,32,1], index: 4, kind: input, shape index: {}]
  %s5 = inlined_call_operand.vmem [shape: f32[8,32], index: 5, kind: input, shape index: {}]
  %s6 = inlined_call_operand.vmem [shape: f32[8,1], index: 6, kind: input, shape index: {}]
  %s7 = inlined_call_operand.hbm [shape: f32[2,8,128], index: 7, kind: output, shape index: {}]
  %s8 = sld [smem:[#allocation0]]
  $region38: #{timeinator_forward.1} parent=0
    _
  %s10 = ssub.s32 1, %s8
  %s11 = scalar_select 0, %s10, %s8
  $region1: #{timeinator_forward.1} parent=0
    #allocation3 [shape = 'u8[8192]{0}', space=vmem, size = 0x2000, scoped, tag = 'output window, operand 0, single buffered']
    #allocation4 [shape = 's32[1]{0}', space=sflag, size = 0x4, scoped, tag = 'scoped memory for timeinator_forward.1']
    %12 = vsyncpa [#allocation4], 0
    // Predicated region
    $region2: #{timeinator_forward.1} parent=1 // pred_check
      _
    $region3: #{timeinator_forward.1} parent=1 // pred_check_branch
      %14 = sbr.rel (0) target = $region5
    $region4: #{timeinator_forward.1} parent=1 // pred_region
      _
    $region5: #{timeinator_forward.1} parent=1 // pred_fallthru
      _
    // Predicated region
    $region6: #{timeinator_forward.1} parent=1 // pred_check
      _
    $region7: #{timeinator_forward.1} parent=1 // pred_check_branch
      %16 = sbr.rel (0) target = $region9
    $region8: #{timeinator_forward.1} parent=1 // pred_region
      _
    $region9: #{timeinator_forward.1} parent=1 // pred_fallthru
      _
    // Predicated region
    $region10: #{timeinator_forward.1} parent=1 // pred_check
      _
    $region11: #{timeinator_forward.1} parent=1 // pred_check_branch
      %18 = sbr.rel (0) target = $region13
    $region12: #{timeinator_forward.1} parent=1 // pred_region
      _
    $region13: #{timeinator_forward.1} parent=1 // pred_fallthru
      _
    // Predicated region
    $region14: #{timeinator_forward.1} parent=1 // pred_check
      _
    $region15: #{timeinator_forward.1} parent=1 // pred_check_branch
      %20 = sbr.rel (0) target = $region17
    $region16: #{timeinator_forward.1} parent=1 // pred_region
      _
    $region17: #{timeinator_forward.1} parent=1 // pred_fallthru
      _
    // Predicated region
    $region18: #{timeinator_forward.1} parent=1 // pred_check
      _
    $region19: #{timeinator_forward.1} parent=1 // pred_check_branch
      %22 = sbr.rel (0) target = $region21
    $region20: #{timeinator_forward.1} parent=1 // pred_region
      _
    $region21: #{timeinator_forward.1} parent=1 // pred_fallthru
      _
    // Predicated region
    $region22: #{timeinator_forward.1} parent=1 // pred_check
      _
    $region23: #{timeinator_forward.1} parent=1 // pred_check_branch
      %24 = sbr.rel (0) target = $region25
    $region24: #{timeinator_forward.1} parent=1 // pred_region
      _
    $region25: #{timeinator_forward.1} parent=1 // pred_fallthru
      _
    // Predicated region
    $region26: #{timeinator_forward.1} parent=1 // pred_check
      _
    $region27: #{timeinator_forward.1} parent=1 // pred_check_branch
      %26 = sbr.rel (0) target = $region29
    $region28: #{timeinator_forward.1} parent=1 // pred_region
      _
    $region29: #{timeinator_forward.1} parent=1 // pred_fallthru
      _
    %v27 = vld [vmem:[%s0] sm:$0xff]
    %v28 = vld [vmem:[%s0 + $0x8] sm:$0xff]
    %s29 = scalar_lea.vmem %s0, 16
    %v30 = vld [vmem:[%s29] sm:$0xff]
    %v31 = vld [vmem:[%s29 + $0x8] sm:$0xff]
    %v32 = vld [vmem:[%s1] sm:$0xff]
    %v33 = vld [vmem:[%s1 + $0x8] sm:$0xff]
    %v34 = vld [vmem:[%s1 + $0x10] sm:$0xff]
    %v35 = vld [vmem:[%s1 + $0x18] sm:$0xff]
    %v36 = vld [vmem:[%s2] sm:$0xff]
    %v37 = vld [vmem:[%s2 + $0x8] sm:$0xff]
    %v38 = vld [vmem:[%s2 + $0x10] sm:$0xff]
    %v39 = vld [vmem:[%s2 + $0x18] sm:$0xff]
    %41 = vset.pattern.permute.xlu0 0
    %42 = vperm.xlu0 %41, %v36
    %v43 = vpop.permute.xlu0 %42
    %46 = vset.pattern.permute.xlu0 0
    %47 = vperm.xlu0 %46, %v37
    %v48 = vpop.permute.xlu0 %47
    %51 = vset.pattern.permute.xlu0 0
    %52 = vperm.xlu0 %51, %v38
    %v53 = vpop.permute.xlu0 %52
    %56 = vset.pattern.permute.xlu0 0
    %57 = vperm.xlu0 %56, %v39
    %v58 = vpop.permute.xlu0 %57
    %vm60 = vcmask 130048
    %v62 = vsel %vm60, %v32, 0
    %v65 = vsel %vm60, %v33, 0
    %v68 = vsel %vm60, %v34, 0
    %v71 = vsel %vm60, %v35, 0
    %73 = vmatprep.subr.mxu0 %v30
    %74 = vmatpush1.msra.mxu0 %v27
    %75 = vmatprep.subr.mxu0 %v31
    %76 = vmatpush1.msra.mxu0 %v28
    %77 = vmatprep.subr.mxu0 0.0
    %78 = vmatpush1.msra.mxu0 0.0
    %79 = vmatprep.subr.mxu0 0.0
    %80 = vmatpush1.msra.mxu0 0.0
    %81 = vmatprep.subr.mxu0 0.0
    %82 = vmatpush1.msra.mxu0 0.0
    %83 = vmatprep.subr.mxu0 0.0
    %84 = vmatpush1.msra.mxu0 0.0
    %85 = vmatprep.subr.mxu0 0.0
    %86 = vmatpush1.msra.mxu0 0.0
    %87 = vmatprep.subr.mxu0 0.0
    %88 = vmatpush1.msra.mxu0 0.0
    %89 = vmatprep.subr.mxu0 0.0
    %90 = vmatpush1.msra.mxu0 0.0
    %91 = vmatprep.subr.mxu0 0.0
    %92 = vmatpush1.msra.mxu0 0.0
    %93 = vmatprep.subr.mxu0 0.0
    %94 = vmatpush1.msra.mxu0 0.0
    %95 = vmatprep.subr.mxu0 0.0
    %96 = vmatpush1.msra.mxu0 0.0
    %97 = vmatprep.subr.mxu0 0.0
    %98 = vmatpush1.msra.mxu0 0.0
    %99 = vmatprep.subr.mxu0 0.0
    %100 = vmatpush1.msra.mxu0 0.0
    %101 = vmatprep.subr.mxu0 0.0
    %102 = vmatpush1.msra.mxu0 0.0
    %103 = vmatprep.subr.mxu0 0.0
    %104 = vmatpush1.msra.mxu0 0.0
    %105 = vmatprep.subr.mxu0 0.0
    %106 = vmatpush1.msra.mxu0 0.0
    %107 = vmatprep.subr.mxu0 0.0
    %108 = vmatpush1.msra.mxu0 0.0
    %109 = vmatprep.subr.mxu0 0.0
    %110 = vmatpush1.msra.mxu0 0.0
    %111 = vmatprep.subr.mxu0 0.0
    %112 = vmatpush1.msra.mxu0 0.0
    %113 = vmatprep.subr.mxu0 0.0
    %114 = vmatpush1.msra.mxu0 0.0
    %115 = vmatprep.subr.mxu0 0.0
    %116 = vmatpush1.msra.mxu0 0.0
    %117 = vmatprep.subr.mxu0 0.0
    %118 = vmatpush1.msra.mxu0 0.0
    %119 = vmatprep.subr.mxu0 0.0
    %120 = vmatpush1.msra.mxu0 0.0
    %121 = vmatprep.subr.mxu0 0.0
    %122 = vmatpush1.msra.mxu0 0.0
    %123 = vmatprep.subr.mxu0 0.0
    %124 = vmatpush1.msra.mxu0 0.0
    %125 = vmatprep.subr.mxu0 0.0
    %126 = vmatpush1.msra.mxu0 0.0
    %127 = vmatprep.subr.mxu0 0.0
    %128 = vmatpush1.msra.mxu0 0.0
    %129 = vmatprep.subr.mxu0 0.0
    %130 = vmatpush1.msra.mxu0 0.0
    %131 = vmatprep.subr.mxu0 0.0
    %132 = vmatpush1.msra.mxu0 0.0
    %133 = vmatprep.subr.mxu0 0.0
    %134 = vmatpush1.msra.mxu0 0.0
    %135 = vmatprep.subr.mxu0 0.0
    %136 = vmatpush1.msra.mxu0 0.0
    %137 = vmatprep.mubr.f32.mxu0 0.0
    %138 = vmatmul.mubr.f32.gmra.mrb[0].mxu0 %v62
    %v139 = vpop.f32.mrb[0].mxu0
    %v140 = vadd.f32 %v43, %v139
    %v141 = vpop.f32.mrb[0].mxu0
    %v142 = vadd.f32 %v43, %v141
    %143 = vmatprep.mubr.f32.mxu0 0.0
    %144 = vmatmul.mubr.f32.gmra.mrb[0].mxu0 %v65
    %v145 = vpop.f32.mrb[0].mxu0
    %v146 = vadd.f32 %v48, %v145
    %v147 = vpop.f32.mrb[0].mxu0
    %v148 = vadd.f32 %v48, %v147
    %149 = vmatprep.mubr.f32.mxu0 0.0
    %150 = vmatmul.mubr.f32.gmra.mrb[0].mxu0 %v68
    %v151 = vpop.f32.mrb[0].mxu0
    %v152 = vadd.f32 %v53, %v151
    %v153 = vpop.f32.mrb[0].mxu0
    %v154 = vadd.f32 %v53, %v153
    %155 = vmatprep.mubr.f32.mxu0 0.0
    %156 = vmatmul.mubr.f32.gmra.mrb[0].mxu0 %v71
    %v157 = vpop.f32.mrb[0].mxu0
    %v158 = vadd.f32 %v58, %v157
    %v159 = vpop.f32.mrb[0].mxu0
    %v160 = vadd.f32 %v58, %v159
    %161 = vdwg.mxu0
    %v162 = vld [vmem:[%s3] sm:$0xff]
    %v163 = vld [vmem:[%s3 + $0x8] sm:$0xff]
    %v164 = vld [vmem:[%s3 + $0x10] sm:$0xff]
    %v165 = vld [vmem:[%s3 + $0x18] sm:$0xff]
    %v166 = vld [vmem:[%s4] sm:$0xff]
    %v167 = vld [vmem:[%s4 + $0x8] sm:$0xff]
    %v168 = vld [vmem:[%s4 + $0x10] sm:$0xff]
    %v169 = vld [vmem:[%s4 + $0x18] sm:$0xff]
    %170 = vst [vmem:[#allocation2 + $0x40] sm:$0xff] %v140
    %171 = vst [vmem:[#allocation2 + $0x48] sm:$0xff] %v142
    %172 = vst [vmem:[#allocation2 + $0x50] sm:$0xff] %v146
    %173 = vst [vmem:[#allocation2 + $0x58] sm:$0xff] %v148
    %174 = vst [vmem:[#allocation2 + $0x60] sm:$0xff] %v152
    %175 = vst [vmem:[#allocation2 + $0x68] sm:$0xff] %v154
    %176 = vst [vmem:[#allocation2 + $0x70] sm:$0xff] %v158
    %177 = vst [vmem:[#allocation2 + $0x78] sm:$0xff] %v160
    %vm178 = vcmask 7168
    %179 = vst.msk [vmem:[#allocation2] sm:$0xff] %vm178, 0.0
    %180 = vst.msk [vmem:[#allocation2 + $0x10] sm:$0xff] %vm178, 0.0
    %181 = vst.msk [vmem:[#allocation2 + $0x20] sm:$0xff] %vm178, 0.0
    %182 = vst.msk [vmem:[#allocation2 + $0x30] sm:$0xff] %vm178, 0.0
    %187 = vrot.lane.b32.xlu0 %v140, 1
    %v188 = vpop.permute.xlu0 %187
    %189 = vrot.lane.b32.xlu0 %v146, 1
    %v190 = vpop.permute.xlu0 %189
    %191 = vrot.lane.b32.xlu0 %v152, 1
    %v192 = vpop.permute.xlu0 %191
    %193 = vrot.lane.b32.xlu0 %v158, 1
    %v194 = vpop.permute.xlu0 %193
    %vm199 = vcmask 1047560
    %200 = vst.msk [vmem:[#allocation2] sm:$0xff] %vm199, %v188
    %201 = vst.msk [vmem:[#allocation2 + $0x10] sm:$0xff] %vm199, %v190
    %202 = vst.msk [vmem:[#allocation2 + $0x20] sm:$0xff] %vm199, %v192
    %203 = vst.msk [vmem:[#allocation2 + $0x30] sm:$0xff] %vm199, %v194
    %204 = vrot.lane.b32.xlu0 %v140, 127
    %v205 = vpop.permute.xlu0 %204
    %206 = vrot.lane.b32.xlu0 %v146, 127
    %v207 = vpop.permute.xlu0 %206
    %208 = vrot.lane.b32.xlu0 %v152, 127
    %v209 = vpop.permute.xlu0 %208
    %210 = vrot.lane.b32.xlu0 %v158, 127
    %v211 = vpop.permute.xlu0 %210
    %vm216 = vcmask 1039360
    %217 = vst.msk [vmem:[#allocation2 + $0x80] sm:$0xff] %vm216, %v205
    %218 = vst.msk [vmem:[#allocation2 + $0x90] sm:$0xff] %vm216, %v207
    %219 = vst.msk [vmem:[#allocation2 + $0xa0] sm:$0xff] %vm216, %v209
    %220 = vst.msk [vmem:[#allocation2 + $0xb0] sm:$0xff] %vm216, %v211
    %vm221 = vcmask 1048568
    %222 = vst.msk [vmem:[#allocation2 + $0x80] sm:$0xff] %vm221, 0.0
    %223 = vst.msk [vmem:[#allocation2 + $0x90] sm:$0xff] %vm221, 0.0
    %224 = vst.msk [vmem:[#allocation2 + $0xa0] sm:$0xff] %vm221, 0.0
    %225 = vst.msk [vmem:[#allocation2 + $0xb0] sm:$0xff] %vm221, 0.0
    %226 = vst.msk [vmem:[#allocation2 + $0x8] sm:$0xff] %vm178, 0.0
    %227 = vst.msk [vmem:[#allocation2 + $0x18] sm:$0xff] %vm178, 0.0
    %228 = vst.msk [vmem:[#allocation2 + $0x28] sm:$0xff] %vm178, 0.0
    %229 = vst.msk [vmem:[#allocation2 + $0x38] sm:$0xff] %vm178, 0.0
    %234 = vrot.lane.b32.xlu0 %v142, 1
    %v235 = vpop.permute.xlu0 %234
    %236 = vrot.lane.b32.xlu0 %v148, 1
    %v237 = vpop.permute.xlu0 %236
    %238 = vrot.lane.b32.xlu0 %v154, 1
    %v239 = vpop.permute.xlu0 %238
    %240 = vrot.lane.b32.xlu0 %v160, 1
    %v241 = vpop.permute.xlu0 %240
    %246 = vst.msk [vmem:[#allocation2 + $0x8] sm:$0xff] %vm199, %v235
    %247 = vst.msk [vmem:[#allocation2 + $0x18] sm:$0xff] %vm199, %v237
    %248 = vst.msk [vmem:[#allocation2 + $0x28] sm:$0xff] %vm199, %v239
    %249 = vst.msk [vmem:[#allocation2 + $0x38] sm:$0xff] %vm199, %v241
    %250 = vrot.lane.b32.xlu0 %v142, 127
    %v251 = vpop.permute.xlu0 %250
    %252 = vrot.lane.b32.xlu0 %v148, 127
    %v253 = vpop.permute.xlu0 %252
    %254 = vrot.lane.b32.xlu0 %v154, 127
    %v255 = vpop.permute.xlu0 %254
    %256 = vrot.lane.b32.xlu0 %v160, 127
    %v257 = vpop.permute.xlu0 %256
    %262 = vst.msk [vmem:[#allocation2 + $0x88] sm:$0xff] %vm216, %v251
    %263 = vst.msk [vmem:[#allocation2 + $0x98] sm:$0xff] %vm216, %v253
    %264 = vst.msk [vmem:[#allocation2 + $0xa8] sm:$0xff] %vm216, %v255
    %265 = vst.msk [vmem:[#allocation2 + $0xb8] sm:$0xff] %vm216, %v257
    %266 = vst.msk [vmem:[#allocation2 + $0x88] sm:$0xff] %vm221, 0.0
    %267 = vst.msk [vmem:[#allocation2 + $0x98] sm:$0xff] %vm221, 0.0
    %268 = vst.msk [vmem:[#allocation2 + $0xa8] sm:$0xff] %vm221, 0.0
    %269 = vst.msk [vmem:[#allocation2 + $0xb8] sm:$0xff] %vm221, 0.0
    %v270 = vld [vmem:[#allocation2] sm:$0xff]
    %v271 = vld [vmem:[#allocation2 + $0x8] sm:$0xff]
    %v272 = vld [vmem:[#allocation2 + $0x10] sm:$0xff]
    %v273 = vld [vmem:[#allocation2 + $0x18] sm:$0xff]
    %v274 = vld [vmem:[#allocation2 + $0x20] sm:$0xff]
    %v275 = vld [vmem:[#allocation2 + $0x28] sm:$0xff]
    %v276 = vld [vmem:[#allocation2 + $0x30] sm:$0xff]
    %v277 = vld [vmem:[#allocation2 + $0x38] sm:$0xff]
    %v278 = vld [vmem:[#allocation2 + $0x40] sm:$0xff]
    %v279 = vld [vmem:[#allocation2 + $0x48] sm:$0xff]
    %v280 = vld [vmem:[#allocation2 + $0x50] sm:$0xff]
    %v281 = vld [vmem:[#allocation2 + $0x58] sm:$0xff]
    %v282 = vld [vmem:[#allocation2 + $0x60] sm:$0xff]
    %v283 = vld [vmem:[#allocation2 + $0x68] sm:$0xff]
    %v284 = vld [vmem:[#allocation2 + $0x70] sm:$0xff]
    %v285 = vld [vmem:[#allocation2 + $0x78] sm:$0xff]
    %v286 = vld [vmem:[#allocation2 + $0x80] sm:$0xff]
    %v287 = vld [vmem:[#allocation2 + $0x88] sm:$0xff]
    %v288 = vld [vmem:[#allocation2 + $0x90] sm:$0xff]
    %v289 = vld [vmem:[#allocation2 + $0x98] sm:$0xff]
    %v290 = vld [vmem:[#allocation2 + $0xa0] sm:$0xff]
    %v291 = vld [vmem:[#allocation2 + $0xa8] sm:$0xff]
    %v292 = vld [vmem:[#allocation2 + $0xb0] sm:$0xff]
    %v293 = vld [vmem:[#allocation2 + $0xb8] sm:$0xff]
    %295 = vset.pattern.permute.xlu0 0
    %296 = vperm.xlu0 %295, %v166
    %v297 = vpop.permute.xlu0 %296
    %300 = vset.pattern.permute.xlu0 0
    %301 = vperm.xlu0 %300, %v167
    %v302 = vpop.permute.xlu0 %301
    %305 = vset.pattern.permute.xlu0 0
    %306 = vperm.xlu0 %305, %v168
    %v307 = vpop.permute.xlu0 %306
    %310 = vset.pattern.permute.xlu0 0
    %311 = vperm.xlu0 %310, %v169
    %v312 = vpop.permute.xlu0 %311
    %vm314 = vcmask 785408
    %v316 = vsel %vm314, %v162, 0
    %v319 = vsel %vm314, %v163, 0
    %v322 = vsel %vm314, %v164, 0
    %v325 = vsel %vm314, %v165, 0
    %327 = vmatprep.subr.mxu0 %v271
    %328 = vmatpush1.msra.mxu0 %v270
    %329 = vmatprep.subr.mxu0 %v273
    %330 = vmatpush1.msra.mxu0 %v272
    %331 = vmatprep.subr.mxu0 %v275
    %332 = vmatpush1.msra.mxu0 %v274
    %333 = vmatprep.subr.mxu0 %v277
    %334 = vmatpush1.msra.mxu0 %v276
    %335 = vmatprep.subr.mxu0 %v279
    %336 = vmatpush1.msra.mxu0 %v278
    %337 = vmatprep.subr.mxu0 %v281
    %338 = vmatpush1.msra.mxu0 %v280
    %339 = vmatprep.subr.mxu0 %v283
    %340 = vmatpush1.msra.mxu0 %v282
    %341 = vmatprep.subr.mxu0 %v285
    %342 = vmatpush1.msra.mxu0 %v284
    %343 = vmatprep.subr.mxu0 %v287
    %344 = vmatpush1.msra.mxu0 %v286
    %345 = vmatprep.subr.mxu0 %v289
    %346 = vmatpush1.msra.mxu0 %v288
    %347 = vmatprep.subr.mxu0 %v291
    %348 = vmatpush1.msra.mxu0 %v290
    %349 = vmatprep.subr.mxu0 %v293
    %350 = vmatpush1.msra.mxu0 %v292
    %351 = vmatprep.subr.mxu0 0.0
    %352 = vmatpush1.msra.mxu0 0.0
    %353 = vmatprep.subr.mxu0 0.0
    %354 = vmatpush1.msra.mxu0 0.0
    %355 = vmatprep.subr.mxu0 0.0
    %356 = vmatpush1.msra.mxu0 0.0
    %357 = vmatprep.subr.mxu0 0.0
    %358 = vmatpush1.msra.mxu0 0.0
    %359 = vmatprep.subr.mxu0 0.0
    %360 = vmatpush1.msra.mxu0 0.0
    %361 = vmatprep.subr.mxu0 0.0
    %362 = vmatpush1.msra.mxu0 0.0
    %363 = vmatprep.subr.mxu0 0.0
    %364 = vmatpush1.msra.mxu0 0.0
    %365 = vmatprep.subr.mxu0 0.0
    %366 = vmatpush1.msra.mxu0 0.0
    %367 = vmatprep.subr.mxu0 0.0
    %368 = vmatpush1.msra.mxu0 0.0
    %369 = vmatprep.subr.mxu0 0.0
    %370 = vmatpush1.msra.mxu0 0.0
    %371 = vmatprep.subr.mxu0 0.0
    %372 = vmatpush1.msra.mxu0 0.0
    %373 = vmatprep.subr.mxu0 0.0
    %374 = vmatpush1.msra.mxu0 0.0
    %375 = vmatprep.subr.mxu0 0.0
    %376 = vmatpush1.msra.mxu0 0.0
    %377 = vmatprep.subr.mxu0 0.0
    %378 = vmatpush1.msra.mxu0 0.0
    %379 = vmatprep.subr.mxu0 0.0
    %380 = vmatpush1.msra.mxu0 0.0
    %381 = vmatprep.subr.mxu0 0.0
    %382 = vmatpush1.msra.mxu0 0.0
    %383 = vmatprep.subr.mxu0 0.0
    %384 = vmatpush1.msra.mxu0 0.0
    %385 = vmatprep.subr.mxu0 0.0
    %386 = vmatpush1.msra.mxu0 0.0
    %387 = vmatprep.subr.mxu0 0.0
    %388 = vmatpush1.msra.mxu0 0.0
    %389 = vmatprep.subr.mxu0 0.0
    %390 = vmatpush1.msra.mxu0 0.0
    %391 = vmatprep.mubr.f32.mxu0 0.0
    %392 = vmatmul.mubr.f32.gmra.mrb[0].mxu0 %v316
    %v393 = vpop.f32.mrb[0].mxu0
    %v394 = vadd.f32 %v297, %v393
    %v395 = vpop.f32.mrb[0].mxu0
    %v396 = vadd.f32 %v297, %v395
    %397 = vmatprep.mubr.f32.mxu0 0.0
    %398 = vmatmul.mubr.f32.gmra.mrb[0].mxu0 %v319
    %v399 = vpop.f32.mrb[0].mxu0
    %v400 = vadd.f32 %v302, %v399
    %v401 = vpop.f32.mrb[0].mxu0
    %v402 = vadd.f32 %v302, %v401
    %403 = vmatprep.mubr.f32.mxu0 0.0
    %404 = vmatmul.mubr.f32.gmra.mrb[0].mxu0 %v322
    %v405 = vpop.f32.mrb[0].mxu0
    %v406 = vadd.f32 %v307, %v405
    %v407 = vpop.f32.mrb[0].mxu0
    %v408 = vadd.f32 %v307, %v407
    %409 = vmatprep.mubr.f32.mxu0 0.0
    %410 = vmatmul.mubr.f32.gmra.mrb[0].mxu0 %v325
    %v411 = vpop.f32.mrb[0].mxu0
    %v412 = vadd.f32 %v312, %v411
    %v413 = vpop.f32.mrb[0].mxu0
    %v414 = vadd.f32 %v312, %v413
    %415 = vdwg.mxu0
    %v416 = vmax.f32 %v394, 0.0
    %v417 = vmax.f32 %v396, 0.0
    %v418 = vmax.f32 %v400, 0.0
    %v419 = vmax.f32 %v402, 0.0
    %v420 = vmax.f32 %v406, 0.0
    %v421 = vmax.f32 %v408, 0.0
    %v422 = vmax.f32 %v412, 0.0
    %v423 = vmax.f32 %v414, 0.0
    %v424 = vadd.f32 %v416, %v140
    %v425 = vadd.f32 %v417, %v142
    %v426 = vadd.f32 %v418, %v146
    %v427 = vadd.f32 %v419, %v148
    %v428 = vadd.f32 %v420, %v152
    %v429 = vadd.f32 %v421, %v154
    %v430 = vadd.f32 %v422, %v158
    %v431 = vadd.f32 %v423, %v160
    %s432 = scalar_lea.vmem %s3, 32
    %v433 = vld [vmem:[%s432] sm:$0xff]
    %v434 = vld [vmem:[%s432 + $0x8] sm:$0xff]
    %v435 = vld [vmem:[%s432 + $0x10] sm:$0xff]
    %v436 = vld [vmem:[%s432 + $0x18] sm:$0xff]
    %s437 = scalar_lea.vmem %s4, 32
    %v438 = vld [vmem:[%s437] sm:$0xff]
    %v439 = vld [vmem:[%s437 + $0x8] sm:$0xff]
    %v440 = vld [vmem:[%s437 + $0x10] sm:$0xff]
    %v441 = vld [vmem:[%s437 + $0x18] sm:$0xff]
    %442 = vst [vmem:[#allocation2 + $0x40] sm:$0xff] %v424
    %443 = vst [vmem:[#allocation2 + $0x48] sm:$0xff] %v425
    %444 = vst [vmem:[#allocation2 + $0x50] sm:$0xff] %v426
    %445 = vst [vmem:[#allocation2 + $0x58] sm:$0xff] %v427
    %446 = vst [vmem:[#allocation2 + $0x60] sm:$0xff] %v428
    %447 = vst [vmem:[#allocation2 + $0x68] sm:$0xff] %v429
    %448 = vst [vmem:[#allocation2 + $0x70] sm:$0xff] %v430
    %449 = vst [vmem:[#allocation2 + $0x78] sm:$0xff] %v431
    %vm450 = vcmask 15360
    %451 = vst.msk [vmem:[#allocation2] sm:$0xff] %vm450, 0.0
    %452 = vst.msk [vmem:[#allocation2 + $0x10] sm:$0xff] %vm450, 0.0
    %453 = vst.msk [vmem:[#allocation2 + $0x20] sm:$0xff] %vm450, 0.0
    %454 = vst.msk [vmem:[#allocation2 + $0x30] sm:$0xff] %vm450, 0.0
    %459 = vrot.lane.b32.xlu0 %v424, 2
    %v460 = vpop.permute.xlu0 %459
    %461 = vrot.lane.b32.xlu0 %v426, 2
    %v462 = vpop.permute.xlu0 %461
    %463 = vrot.lane.b32.xlu0 %v428, 2
    %v464 = vpop.permute.xlu0 %463
    %465 = vrot.lane.b32.xlu0 %v430, 2
    %v466 = vpop.permute.xlu0 %465
    %vm471 = vcmask 1047568
    %472 = vst.msk [vmem:[#allocation2] sm:$0xff] %vm471, %v460
    %473 = vst.msk [vmem:[#allocation2 + $0x10] sm:$0xff] %vm471, %v462
    %474 = vst.msk [vmem:[#allocation2 + $0x20] sm:$0xff] %vm471, %v464
    %475 = vst.msk [vmem:[#allocation2 + $0x30] sm:$0xff] %vm471, %v466
    %476 = vrot.lane.b32.xlu0 %v424, 126
    %v477 = vpop.permute.xlu0 %476
    %478 = vrot.lane.b32.xlu0 %v426, 126
    %v479 = vpop.permute.xlu0 %478
    %480 = vrot.lane.b32.xlu0 %v428, 126
    %v481 = vpop.permute.xlu0 %480
    %482 = vrot.lane.b32.xlu0 %v430, 126
    %v483 = vpop.permute.xlu0 %482
    %vm488 = vcmask 1031168
    %489 = vst.msk [vmem:[#allocation2 + $0x80] sm:$0xff] %vm488, %v477
    %490 = vst.msk [vmem:[#allocation2 + $0x90] sm:$0xff] %vm488, %v479
    %491 = vst.msk [vmem:[#allocation2 + $0xa0] sm:$0xff] %vm488, %v481
    %492 = vst.msk [vmem:[#allocation2 + $0xb0] sm:$0xff] %vm488, %v483
    %vm493 = vcmask 1048560
    %494 = vst.msk [vmem:[#allocation2 + $0x80] sm:$0xff] %vm493, 0.0
    %495 = vst.msk [vmem:[#allocation2 + $0x90] sm:$0xff] %vm493, 0.0
    %496 = vst.msk [vmem:[#allocation2 + $0xa0] sm:$0xff] %vm493, 0.0
    %497 = vst.msk [vmem:[#allocation2 + $0xb0] sm:$0xff] %vm493, 0.0
    %498 = vst.msk [vmem:[#allocation2 + $0x8] sm:$0xff] %vm450, 0.0
    %499 = vst.msk [vmem:[#allocation2 + $0x18] sm:$0xff] %vm450, 0.0
    %500 = vst.msk [vmem:[#allocation2 + $0x28] sm:$0xff] %vm450, 0.0
    %501 = vst.msk [vmem:[#allocation2 + $0x38] sm:$0xff] %vm450, 0.0
    %506 = vrot.lane.b32.xlu0 %v425, 2
    %v507 = vpop.permute.xlu0 %506
    %508 = vrot.lane.b32.xlu0 %v427, 2
    %v509 = vpop.permute.xlu0 %508
    %510 = vrot.lane.b32.xlu0 %v429, 2
    %v511 = vpop.permute.xlu0 %510
    %512 = vrot.lane.b32.xlu0 %v431, 2
    %v513 = vpop.permute.xlu0 %512
    %518 = vst.msk [vmem:[#allocation2 + $0x8] sm:$0xff] %vm471, %v507
    %519 = vst.msk [vmem:[#allocation2 + $0x18] sm:$0xff] %vm471, %v509
    %520 = vst.msk [vmem:[#allocation2 + $0x28] sm:$0xff] %vm471, %v511
    %521 = vst.msk [vmem:[#allocation2 + $0x38] sm:$0xff] %vm471, %v513
    %522 = vrot.lane.b32.xlu0 %v425, 126
    %v523 = vpop.permute.xlu0 %522
    %524 = vrot.lane.b32.xlu0 %v427, 126
    %v525 = vpop.permute.xlu0 %524
    %526 = vrot.lane.b32.xlu0 %v429, 126
    %v527 = vpop.permute.xlu0 %526
    %528 = vrot.lane.b32.xlu0 %v431, 126
    %v529 = vpop.permute.xlu0 %528
    %534 = vst.msk [vmem:[#allocation2 + $0x88] sm:$0xff] %vm488, %v523
    %535 = vst.msk [vmem:[#allocation2 + $0x98] sm:$0xff] %vm488, %v525
    %536 = vst.msk [vmem:[#allocation2 + $0xa8] sm:$0xff] %vm488, %v527
    %537 = vst.msk [vmem:[#allocation2 + $0xb8] sm:$0xff] %vm488, %v529
    %538 = vst.msk [vmem:[#allocation2 + $0x88] sm:$0xff] %vm493, 0.0
    %539 = vst.msk [vmem:[#allocation2 + $0x98] sm:$0xff] %vm493, 0.0
    %540 = vst.msk [vmem:[#allocation2 + $0xa8] sm:$0xff] %vm493, 0.0
    %541 = vst.msk [vmem:[#allocation2 + $0xb8] sm:$0xff] %vm493, 0.0
    %v542 = vld [vmem:[#allocation2] sm:$0xff]
    %v543 = vld [vmem:[#allocation2 + $0x8] sm:$0xff]
    %v544 = vld [vmem:[#allocation2 + $0x10] sm:$0xff]
    %v545 = vld [vmem:[#allocation2 + $0x18] sm:$0xff]
    %v546 = vld [vmem:[#allocation2 + $0x20] sm:$0xff]
    %v547 = vld [vmem:[#allocation2 + $0x28] sm:$0xff]
    %v548 = vld [vmem:[#allocation2 + $0x30] sm:$0xff]
    %v549 = vld [vmem:[#allocation2 + $0x38] sm:$0xff]
    %v550 = vld [vmem:[#allocation2 + $0x40] sm:$0xff]
    %v551 = vld [vmem:[#allocation2 + $0x48] sm:$0xff]
    %v552 = vld [vmem:[#allocation2 + $0x50] sm:$0xff]
    %v553 = vld [vmem:[#allocation2 + $0x58] sm:$0xff]
    %v554 = vld [vmem:[#allocation2 + $0x60] sm:$0xff]
    %v555 = vld [vmem:[#allocation2 + $0x68] sm:$0xff]
    %v556 = vld [vmem:[#allocation2 + $0x70] sm:$0xff]
    %v557 = vld [vmem:[#allocation2 + $0x78] sm:$0xff]
    %v558 = vld [vmem:[#allocation2 + $0x80] sm:$0xff]
    %v559 = vld [vmem:[#allocation2 + $0x88] sm:$0xff]
    %v560 = vld [vmem:[#allocation2 + $0x90] sm:$0xff]
    %v561 = vld [vmem:[#allocation2 + $0x98] sm:$0xff]
    %v562 = vld [vmem:[#allocation2 + $0xa0] sm:$0xff]
    %v563 = vld [vmem:[#allocation2 + $0xa8] sm:$0xff]
    %v564 = vld [vmem:[#allocation2 + $0xb0] sm:$0xff]
    %v565 = vld [vmem:[#allocation2 + $0xb8] sm:$0xff]
    %567 = vset.pattern.permute.xlu0 0
    %568 = vperm.xlu0 %567, %v438
    %v569 = vpop.permute.xlu0 %568
    %572 = vset.pattern.permute.xlu0 0
    %573 = vperm.xlu0 %572, %v439
    %v574 = vpop.permute.xlu0 %573
    %577 = vset.pattern.permute.xlu0 0
    %578 = vperm.xlu0 %577, %v440
    %v579 = vpop.permute.xlu0 %578
    %582 = vset.pattern.permute.xlu0 0
    %583 = vperm.xlu0 %582, %v441
    %v584 = vpop.permute.xlu0 %583
    %v587 = vsel %vm314, %v433, 0
    %v590 = vsel %vm314, %v434, 0
    %v593 = vsel %vm314, %v435, 0
    %v596 = vsel %vm314, %v436, 0
    %598 = vmatprep.subr.mxu0 %v543
    %599 = vmatpush1.msra.mxu0 %v542
    %600 = vmatprep.subr.mxu0 %v545
    %601 = vmatpush1.msra.mxu0 %v544
    %602 = vmatprep.subr.mxu0 %v547
    %603 = vmatpush1.msra.mxu0 %v546
    %604 = vmatprep.subr.mxu0 %v549
    %605 = vmatpush1.msra.mxu0 %v548
    %606 = vmatprep.subr.mxu0 %v551
    %607 = vmatpush1.msra.mxu0 %v550
    %608 = vmatprep.subr.mxu0 %v553
    %609 = vmatpush1.msra.mxu0 %v552
    %610 = vmatprep.subr.mxu0 %v555
    %611 = vmatpush1.msra.mxu0 %v554
    %612 = vmatprep.subr.mxu0 %v557
    %613 = vmatpush1.msra.mxu0 %v556
    %614 = vmatprep.subr.mxu0 %v559
    %615 = vmatpush1.msra.mxu0 %v558
    %616 = vmatprep.subr.mxu0 %v561
    %617 = vmatpush1.msra.mxu0 %v560
    %618 = vmatprep.subr.mxu0 %v563
    %619 = vmatpush1.msra.mxu0 %v562
    %620 = vmatprep.subr.mxu0 %v565
    %621 = vmatpush1.msra.mxu0 %v564
    %622 = vmatprep.subr.mxu0 0.0
    %623 = vmatpush1.msra.mxu0 0.0
    %624 = vmatprep.subr.mxu0 0.0
    %625 = vmatpush1.msra.mxu0 0.0
    %626 = vmatprep.subr.mxu0 0.0
    %627 = vmatpush1.msra.mxu0 0.0
    %628 = vmatprep.subr.mxu0 0.0
    %629 = vmatpush1.msra.mxu0 0.0
    %630 = vmatprep.subr.mxu0 0.0
    %631 = vmatpush1.msra.mxu0 0.0
    %632 = vmatprep.subr.mxu0 0.0
    %633 = vmatpush1.msra.mxu0 0.0
    %634 = vmatprep.subr.mxu0 0.0
    %635 = vmatpush1.msra.mxu0 0.0
    %636 = vmatprep.subr.mxu0 0.0
    %637 = vmatpush1.msra.mxu0 0.0
    %638 = vmatprep.subr.mxu0 0.0
    %639 = vmatpush1.msra.mxu0 0.0
    %640 = vmatprep.subr.mxu0 0.0
    %641 = vmatpush1.msra.mxu0 0.0
    %642 = vmatprep.subr.mxu0 0.0
    %643 = vmatpush1.msra.mxu0 0.0
    %644 = vmatprep.subr.mxu0 0.0
    %645 = vmatpush1.msra.mxu0 0.0
    %646 = vmatprep.subr.mxu0 0.0
    %647 = vmatpush1.msra.mxu0 0.0
    %648 = vmatprep.subr.mxu0 0.0
    %649 = vmatpush1.msra.mxu0 0.0
    %650 = vmatprep.subr.mxu0 0.0
    %651 = vmatpush1.msra.mxu0 0.0
    %652 = vmatprep.subr.mxu0 0.0
    %653 = vmatpush1.msra.mxu0 0.0
    %654 = vmatprep.subr.mxu0 0.0
    %655 = vmatpush1.msra.mxu0 0.0
    %656 = vmatprep.subr.mxu0 0.0
    %657 = vmatpush1.msra.mxu0 0.0
    %658 = vmatprep.subr.mxu0 0.0
    %659 = vmatpush1.msra.mxu0 0.0
    %660 = vmatprep.subr.mxu0 0.0
    %661 = vmatpush1.msra.mxu0 0.0
    %662 = vmatprep.mubr.f32.mxu0 0.0
    %663 = vmatmul.mubr.f32.gmra.mrb[0].mxu0 %v587
    %v664 = vpop.f32.mrb[0].mxu0
    %v665 = vadd.f32 %v569, %v664
    %v666 = vpop.f32.mrb[0].mxu0
    %v667 = vadd.f32 %v569, %v666
    %668 = vmatprep.mubr.f32.mxu0 0.0
    %669 = vmatmul.mubr.f32.gmra.mrb[0].mxu0 %v590
    %v670 = vpop.f32.mrb[0].mxu0
    %v671 = vadd.f32 %v574, %v670
    %v672 = vpop.f32.mrb[0].mxu0
    %v673 = vadd.f32 %v574, %v672
    %674 = vmatprep.mubr.f32.mxu0 0.0
    %675 = vmatmul.mubr.f32.gmra.mrb[0].mxu0 %v593
    %v676 = vpop.f32.mrb[0].mxu0
    %v677 = vadd.f32 %v579, %v676
    %v678 = vpop.f32.mrb[0].mxu0
    %v679 = vadd.f32 %v579, %v678
    %680 = vmatprep.mubr.f32.mxu0 0.0
    %681 = vmatmul.mubr.f32.gmra.mrb[0].mxu0 %v596
    %v682 = vpop.f32.mrb[0].mxu0
    %v683 = vadd.f32 %v584, %v682
    %v684 = vpop.f32.mrb[0].mxu0
    %v685 = vadd.f32 %v584, %v684
    %686 = vdwg.mxu0
    %v687 = vmax.f32 %v665, 0.0
    %v688 = vmax.f32 %v667, 0.0
    %v689 = vmax.f32 %v671, 0.0
    %v690 = vmax.f32 %v673, 0.0
    %v691 = vmax.f32 %v677, 0.0
    %v692 = vmax.f32 %v679, 0.0
    %v693 = vmax.f32 %v683, 0.0
    %v694 = vmax.f32 %v685, 0.0
    %v695 = vadd.f32 %v687, %v424
    %v696 = vadd.f32 %v688, %v425
    %v697 = vadd.f32 %v689, %v426
    %v698 = vadd.f32 %v690, %v427
    %v699 = vadd.f32 %v691, %v428
    %v700 = vadd.f32 %v692, %v429
    %v701 = vadd.f32 %v693, %v430
    %v702 = vadd.f32 %v694, %v431
    %s703 = scalar_lea.vmem %s3, 64
    %v704 = vld [vmem:[%s703] sm:$0xff]
    %v705 = vld [vmem:[%s703 + $0x8] sm:$0xff]
    %v706 = vld [vmem:[%s703 + $0x10] sm:$0xff]
    %v707 = vld [vmem:[%s703 + $0x18] sm:$0xff]
    %s708 = scalar_lea.vmem %s4, 64
    %v709 = vld [vmem:[%s708] sm:$0xff]
    %v710 = vld [vmem:[%s708 + $0x8] sm:$0xff]
    %v711 = vld [vmem:[%s708 + $0x10] sm:$0xff]
    %v712 = vld [vmem:[%s708 + $0x18] sm:$0xff]
    %713 = vst [vmem:[#allocation2 + $0x40] sm:$0xff] %v695
    %714 = vst [vmem:[#allocation2 + $0x48] sm:$0xff] %v696
    %715 = vst [vmem:[#allocation2 + $0x50] sm:$0xff] %v697
    %716 = vst [vmem:[#allocation2 + $0x58] sm:$0xff] %v698
    %717 = vst [vmem:[#allocation2 + $0x60] sm:$0xff] %v699
    %718 = vst [vmem:[#allocation2 + $0x68] sm:$0xff] %v700
    %719 = vst [vmem:[#allocation2 + $0x70] sm:$0xff] %v701
    %720 = vst [vmem:[#allocation2 + $0x78] sm:$0xff] %v702
    %vm721 = vcmask 31744
    %722 = vst.msk [vmem:[#allocation2] sm:$0xff] %vm721, 0.0
    %723 = vst.msk [vmem:[#allocation2 + $0x10] sm:$0xff] %vm721, 0.0
    %724 = vst.msk [vmem:[#allocation2 + $0x20] sm:$0xff] %vm721, 0.0
    %725 = vst.msk [vmem:[#allocation2 + $0x30] sm:$0xff] %vm721, 0.0
    %730 = vrot.lane.b32.xlu0 %v695, 4
    %v731 = vpop.permute.xlu0 %730
    %732 = vrot.lane.b32.xlu0 %v697, 4
    %v733 = vpop.permute.xlu0 %732
    %734 = vrot.lane.b32.xlu0 %v699, 4
    %v735 = vpop.permute.xlu0 %734
    %736 = vrot.lane.b32.xlu0 %v701, 4
    %v737 = vpop.permute.xlu0 %736
    %vm742 = vcmask 1047584
    %743 = vst.msk [vmem:[#allocation2] sm:$0xff] %vm742, %v731
    %744 = vst.msk [vmem:[#allocation2 + $0x10] sm:$0xff] %vm742, %v733
    %745 = vst.msk [vmem:[#allocation2 + $0x20] sm:$0xff] %vm742, %v735
    %746 = vst.msk [vmem:[#allocation2 + $0x30] sm:$0xff] %vm742, %v737
    %747 = vrot.lane.b32.xlu0 %v695, 124
    %v748 = vpop.permute.xlu0 %747
    %749 = vrot.lane.b32.xlu0 %v697, 124
    %v750 = vpop.permute.xlu0 %749
    %751 = vrot.lane.b32.xlu0 %v699, 124
    %v752 = vpop.permute.xlu0 %751
    %753 = vrot.lane.b32.xlu0 %v701, 124
    %v754 = vpop.permute.xlu0 %753
    %vm759 = vcmask 1014784
    %760 = vst.msk [vmem:[#allocation2 + $0x80] sm:$0xff] %vm759, %v748
    %761 = vst.msk [vmem:[#allocation2 + $0x90] sm:$0xff] %vm759, %v750
    %762 = vst.msk [vmem:[#allocation2 + $0xa0] sm:$0xff] %vm759, %v752
    %763 = vst.msk [vmem:[#allocation2 + $0xb0] sm:$0xff] %vm759, %v754
    %vm764 = vcmask 1048544
    %765 = vst.msk [vmem:[#allocation2 + $0x80] sm:$0xff] %vm764, 0.0
    %766 = vst.msk [vmem:[#allocation2 + $0x90] sm:$0xff] %vm764, 0.0
    %767 = vst.msk [vmem:[#allocation2 + $0xa0] sm:$0xff] %vm764, 0.0
    %768 = vst.msk [vmem:[#allocation2 + $0xb0] sm:$0xff] %vm764, 0.0
    %769 = vst.msk [vmem:[#allocation2 + $0x8] sm:$0xff] %vm721, 0.0
    %770 = vst.msk [vmem:[#allocation2 + $0x18] sm:$0xff] %vm721, 0.0
    %771 = vst.msk [vmem:[#allocation2 + $0x28] sm:$0xff] %vm721, 0.0
    %772 = vst.msk [vmem:[#allocation2 + $0x38] sm:$0xff] %vm721, 0.0
    %777 = vrot.lane.b32.xlu0 %v696, 4
    %v778 = vpop.permute.xlu0 %777
    %779 = vrot.lane.b32.xlu0 %v698, 4
    %v780 = vpop.permute.xlu0 %779
    %781 = vrot.lane.b32.xlu0 %v700, 4
    %v782 = vpop.permute.xlu0 %781
    %783 = vrot.lane.b32.xlu0 %v702, 4
    %v784 = vpop.permute.xlu0 %783
    %789 = vst.msk [vmem:[#allocation2 + $0x8] sm:$0xff] %vm742, %v778
    %790 = vst.msk [vmem:[#allocation2 + $0x18] sm:$0xff] %vm742, %v780
    %791 = vst.msk [vmem:[#allocation2 + $0x28] sm:$0xff] %vm742, %v782
    %792 = vst.msk [vmem:[#allocation2 + $0x38] sm:$0xff] %vm742, %v784
    %793 = vrot.lane.b32.xlu0 %v696, 124
    %v794 = vpop.permute.xlu0 %793
    %795 = vrot.lane.b32.xlu0 %v698, 124
    %v796 = vpop.permute.xlu0 %795
    %797 = vrot.lane.b32.xlu0 %v700, 124
    %v798 = vpop.permute.xlu0 %797
    %799 = vrot.lane.b32.xlu0 %v702, 124
    %v800 = vpop.permute.xlu0 %799
    %805 = vst.msk [vmem:[#allocation2 + $0x88] sm:$0xff] %vm759, %v794
    %806 = vst.msk [vmem:[#allocation2 + $0x98] sm:$0xff] %vm759, %v796
    %807 = vst.msk [vmem:[#allocation2 + $0xa8] sm:$0xff] %vm759, %v798
    %808 = vst.msk [vmem:[#allocation2 + $0xb8] sm:$0xff] %vm759, %v800
    %809 = vst.msk [vmem:[#allocation2 + $0x88] sm:$0xff] %vm764, 0.0
    %810 = vst.msk [vmem:[#allocation2 + $0x98] sm:$0xff] %vm764, 0.0
    %811 = vst.msk [vmem:[#allocation2 + $0xa8] sm:$0xff] %vm764, 0.0
    %812 = vst.msk [vmem:[#allocation2 + $0xb8] sm:$0xff] %vm764, 0.0
    %v813 = vld [vmem:[#allocation2] sm:$0xff]
    %v814 = vld [vmem:[#allocation2 + $0x8] sm:$0xff]
    %v815 = vld [vmem:[#allocation2 + $0x10] sm:$0xff]
    %v816 = vld [vmem:[#allocation2 + $0x18] sm:$0xff]
    %v817 = vld [vmem:[#allocation2 + $0x20] sm:$0xff]
    %v818 = vld [vmem:[#allocation2 + $0x28] sm:$0xff]
    %v819 = vld [vmem:[#allocation2 + $0x30] sm:$0xff]
    %v820 = vld [vmem:[#allocation2 + $0x38] sm:$0xff]
    %v821 = vld [vmem:[#allocation2 + $0x40] sm:$0xff]
    %v822 = vld [vmem:[#allocation2 + $0x48] sm:$0xff]
    %v823 = vld [vmem:[#allocation2 + $0x50] sm:$0xff]
    %v824 = vld [vmem:[#allocation2 + $0x58] sm:$0xff]
    %v825 = vld [vmem:[#allocation2 + $0x60] sm:$0xff]
    %v826 = vld [vmem:[#allocation2 + $0x68] sm:$0xff]
    %v827 = vld [vmem:[#allocation2 + $0x70] sm:$0xff]
    %v828 = vld [vmem:[#allocation2 + $0x78] sm:$0xff]
    %v829 = vld [vmem:[#allocation2 + $0x80] sm:$0xff]
    %v830 = vld [vmem:[#allocation2 + $0x88] sm:$0xff]
    %v831 = vld [vmem:[#allocation2 + $0x90] sm:$0xff]
    %v832 = vld [vmem:[#allocation2 + $0x98] sm:$0xff]
    %v833 = vld [vmem:[#allocation2 + $0xa0] sm:$0xff]
    %v834 = vld [vmem:[#allocation2 + $0xa8] sm:$0xff]
    %v835 = vld [vmem:[#allocation2 + $0xb0] sm:$0xff]
    %v836 = vld [vmem:[#allocation2 + $0xb8] sm:$0xff]
    %838 = vset.pattern.permute.xlu0 0
    %839 = vperm.xlu0 %838, %v709
    %v840 = vpop.permute.xlu0 %839
    %843 = vset.pattern.permute.xlu0 0
    %844 = vperm.xlu0 %843, %v710
    %v845 = vpop.permute.xlu0 %844
    %848 = vset.pattern.permute.xlu0 0
    %849 = vperm.xlu0 %848, %v711
    %v850 = vpop.permute.xlu0 %849
    %853 = vset.pattern.permute.xlu0 0
    %854 = vperm.xlu0 %853, %v712
    %v855 = vpop.permute.xlu0 %854
    %v858 = vsel %vm314, %v704, 0
    %v861 = vsel %vm314, %v705, 0
    %v864 = vsel %vm314, %v706, 0
    %v867 = vsel %vm314, %v707, 0
    %869 = vmatprep.subr.mxu0 %v814
    %870 = vmatpush1.msra.mxu0 %v813
    %871 = vmatprep.subr.mxu0 %v816
    %872 = vmatpush1.msra.mxu0 %v815
    %873 = vmatprep.subr.mxu0 %v818
    %874 = vmatpush1.msra.mxu0 %v817
    %875 = vmatprep.subr.mxu0 %v820
    %876 = vmatpush1.msra.mxu0 %v819
    %877 = vmatprep.subr.mxu0 %v822
    %878 = vmatpush1.msra.mxu0 %v821
    %879 = vmatprep.subr.mxu0 %v824
    %880 = vmatpush1.msra.mxu0 %v823
    %881 = vmatprep.subr.mxu0 %v826
    %882 = vmatpush1.msra.mxu0 %v825
    %883 = vmatprep.subr.mxu0 %v828
    %884 = vmatpush1.msra.mxu0 %v827
    %885 = vmatprep.subr.mxu0 %v830
    %886 = vmatpush1.msra.mxu0 %v829
    %887 = vmatprep.subr.mxu0 %v832
    %888 = vmatpush1.msra.mxu0 %v831
    %889 = vmatprep.subr.mxu0 %v834
    %890 = vmatpush1.msra.mxu0 %v833
    %891 = vmatprep.subr.mxu0 %v836
    %892 = vmatpush1.msra.mxu0 %v835
    %893 = vmatprep.subr.mxu0 0.0
    %894 = vmatpush1.msra.mxu0 0.0
    %895 = vmatprep.subr.mxu0 0.0
    %896 = vmatpush1.msra.mxu0 0.0
    %897 = vmatprep.subr.mxu0 0.0
    %898 = vmatpush1.msra.mxu0 0.0
    %899 = vmatprep.subr.mxu0 0.0
    %900 = vmatpush1.msra.mxu0 0.0
    %901 = vmatprep.subr.mxu0 0.0
    %902 = vmatpush1.msra.mxu0 0.0
    %903 = vmatprep.subr.mxu0 0.0
    %904 = vmatpush1.msra.mxu0 0.0
    %905 = vmatprep.subr.mxu0 0.0
    %906 = vmatpush1.msra.mxu0 0.0
    %907 = vmatprep.subr.mxu0 0.0
    %908 = vmatpush1.msra.mxu0 0.0
    %909 = vmatprep.subr.mxu0 0.0
    %910 = vmatpush1.msra.mxu0 0.0
    %911 = vmatprep.subr.mxu0 0.0
    %912 = vmatpush1.msra.mxu0 0.0
    %913 = vmatprep.subr.mxu0 0.0
    %914 = vmatpush1.msra.mxu0 0.0
    %915 = vmatprep.subr.mxu0 0.0
    %916 = vmatpush1.msra.mxu0 0.0
    %917 = vmatprep.subr.mxu0 0.0
    %918 = vmatpush1.msra.mxu0 0.0
    %919 = vmatprep.subr.mxu0 0.0
    %920 = vmatpush1.msra.mxu0 0.0
    %921 = vmatprep.subr.mxu0 0.0
    %922 = vmatpush1.msra.mxu0 0.0
    %923 = vmatprep.subr.mxu0 0.0
    %924 = vmatpush1.msra.mxu0 0.0
    %925 = vmatprep.subr.mxu0 0.0
    %926 = vmatpush1.msra.mxu0 0.0
    %927 = vmatprep.subr.mxu0 0.0
    %928 = vmatpush1.msra.mxu0 0.0
    %929 = vmatprep.subr.mxu0 0.0
    %930 = vmatpush1.msra.mxu0 0.0
    %931 = vmatprep.subr.mxu0 0.0
    %932 = vmatpush1.msra.mxu0 0.0
    %933 = vmatprep.mubr.f32.mxu0 0.0
    %934 = vmatmul.mubr.f32.gmra.mrb[0].mxu0 %v858
    %v935 = vpop.f32.mrb[0].mxu0
    %v936 = vadd.f32 %v840, %v935
    %v937 = vpop.f32.mrb[0].mxu0
    %v938 = vadd.f32 %v840, %v937
    %939 = vmatprep.mubr.f32.mxu0 0.0
    %940 = vmatmul.mubr.f32.gmra.mrb[0].mxu0 %v861
    %v941 = vpop.f32.mrb[0].mxu0
    %v942 = vadd.f32 %v845, %v941
    %v943 = vpop.f32.mrb[0].mxu0
    %v944 = vadd.f32 %v845, %v943
    %945 = vmatprep.mubr.f32.mxu0 0.0
    %946 = vmatmul.mubr.f32.gmra.mrb[0].mxu0 %v864
    %v947 = vpop.f32.mrb[0].mxu0
    %v948 = vadd.f32 %v850, %v947
    %v949 = vpop.f32.mrb[0].mxu0
    %v950 = vadd.f32 %v850, %v949
    %951 = vmatprep.mubr.f32.mxu0 0.0
    %952 = vmatmul.mubr.f32.gmra.mrb[0].mxu0 %v867
    %v953 = vpop.f32.mrb[0].mxu0
    %v954 = vadd.f32 %v855, %v953
    %v955 = vpop.f32.mrb[0].mxu0
    %v956 = vadd.f32 %v855, %v955
    %957 = vdwg.mxu0
    %v958 = vmax.f32 %v936, 0.0
    %v959 = vmax.f32 %v938, 0.0
    %v960 = vmax.f32 %v942, 0.0
    %v961 = vmax.f32 %v944, 0.0
    %v962 = vmax.f32 %v948, 0.0
    %v963 = vmax.f32 %v950, 0.0
    %v964 = vmax.f32 %v954, 0.0
    %v965 = vmax.f32 %v956, 0.0
    %v966 = vadd.f32 %v958, %v695
    %v967 = vadd.f32 %v959, %v696
    %v968 = vadd.f32 %v960, %v697
    %v969 = vadd.f32 %v961, %v698
    %v970 = vadd.f32 %v962, %v699
    %v971 = vadd.f32 %v963, %v700
    %v972 = vadd.f32 %v964, %v701
    %v973 = vadd.f32 %v965, %v702
    %s974 = scalar_lea.vmem %s3, 96
    %v975 = vld [vmem:[%s974] sm:$0xff]
    %v976 = vld [vmem:[%s974 + $0x8] sm:$0xff]
    %v977 = vld [vmem:[%s974 + $0x10] sm:$0xff]
    %v978 = vld [vmem:[%s974 + $0x18] sm:$0xff]
    %s979 = scalar_lea.vmem %s4, 96
    %v980 = vld [vmem:[%s979] sm:$0xff]
    %v981 = vld [vmem:[%s979 + $0x8] sm:$0xff]
    %v982 = vld [vmem:[%s979 + $0x10] sm:$0xff]
    %v983 = vld [vmem:[%s979 + $0x18] sm:$0xff]
    %984 = vst [vmem:[#allocation2 + $0x40] sm:$0xff] %v966
    %985 = vst [vmem:[#allocation2 + $0x48] sm:$0xff] %v967
    %986 = vst [vmem:[#allocation2 + $0x50] sm:$0xff] %v968
    %987 = vst [vmem:[#allocation2 + $0x58] sm:$0xff] %v969
    %988 = vst [vmem:[#allocation2 + $0x60] sm:$0xff] %v970
    %989 = vst [vmem:[#allocation2 + $0x68] sm:$0xff] %v971
    %990 = vst [vmem:[#allocation2 + $0x70] sm:$0xff] %v972
    %991 = vst [vmem:[#allocation2 + $0x78] sm:$0xff] %v973
    %992 = vst.msk [vmem:[#allocation2] sm:$0xff] %vm178, 0.0
    %993 = vst.msk [vmem:[#allocation2 + $0x10] sm:$0xff] %vm178, 0.0
    %994 = vst.msk [vmem:[#allocation2 + $0x20] sm:$0xff] %vm178, 0.0
    %995 = vst.msk [vmem:[#allocation2 + $0x30] sm:$0xff] %vm178, 0.0
    %1000 = vrot.lane.b32.xlu0 %v966, 1
    %v1001 = vpop.permute.xlu0 %1000
    %1002 = vrot.lane.b32.xlu0 %v968, 1
    %v1003 = vpop.permute.xlu0 %1002
    %1004 = vrot.lane.b32.xlu0 %v970, 1
    %v1005 = vpop.permute.xlu0 %1004
    %1006 = vrot.lane.b32.xlu0 %v972, 1
    %v1007 = vpop.permute.xlu0 %1006
    %1012 = vst.msk [vmem:[#allocation2] sm:$0xff] %vm199, %v1001
    %1013 = vst.msk [vmem:[#allocation2 + $0x10] sm:$0xff] %vm199, %v1003
    %1014 = vst.msk [vmem:[#allocation2 + $0x20] sm:$0xff] %vm199, %v1005
    %1015 = vst.msk [vmem:[#allocation2 + $0x30] sm:$0xff] %vm199, %v1007
    %1016 = vrot.lane.b32.xlu0 %v966, 127
    %v1017 = vpop.permute.xlu0 %1016
    %1018 = vrot.lane.b32.xlu0 %v968, 127
    %v1019 = vpop.permute.xlu0 %1018
    %1020 = vrot.lane.b32.xlu0 %v970, 127
    %v1021 = vpop.permute.xlu0 %1020
    %1022 = vrot.lane.b32.xlu0 %v972, 127
    %v1023 = vpop.permute.xlu0 %1022
    %1028 = vst.msk [vmem:[#allocation2 + $0x80] sm:$0xff] %vm216, %v1017
    %1029 = vst.msk [vmem:[#allocation2 + $0x90] sm:$0xff] %vm216, %v1019
    %1030 = vst.msk [vmem:[#allocation2 + $0xa0] sm:$0xff] %vm216, %v1021
    %1031 = vst.msk [vmem:[#allocation2 + $0xb0] sm:$0xff] %vm216, %v1023
    %1032 = vst.msk [vmem:[#allocation2 + $0x80] sm:$0xff] %vm221, 0.0
    %1033 = vst.msk [vmem:[#allocation2 + $0x90] sm:$0xff] %vm221, 0.0
    %1034 = vst.msk [vmem:[#allocation2 + $0xa0] sm:$0xff] %vm221, 0.0
    %1035 = vst.msk [vmem:[#allocation2 + $0xb0] sm:$0xff] %vm221, 0.0
    %1036 = vst.msk [vmem:[#allocation2 + $0x8] sm:$0xff] %vm178, 0.0
    %1037 = vst.msk [vmem:[#allocation2 + $0x18] sm:$0xff] %vm178, 0.0
    %1038 = vst.msk [vmem:[#allocation2 + $0x28] sm:$0xff] %vm178, 0.0
    %1039 = vst.msk [vmem:[#allocation2 + $0x38] sm:$0xff] %vm178, 0.0
    %1044 = vrot.lane.b32.xlu0 %v967, 1
    %v1045 = vpop.permute.xlu0 %1044
    %1046 = vrot.lane.b32.xlu0 %v969, 1
    %v1047 = vpop.permute.xlu0 %1046
    %1048 = vrot.lane.b32.xlu0 %v971, 1
    %v1049 = vpop.permute.xlu0 %1048
    %1050 = vrot.lane.b32.xlu0 %v973, 1
    %v1051 = vpop.permute.xlu0 %1050
    %1056 = vst.msk [vmem:[#allocation2 + $0x8] sm:$0xff] %vm199, %v1045
    %1057 = vst.msk [vmem:[#allocation2 + $0x18] sm:$0xff] %vm199, %v1047
    %1058 = vst.msk [vmem:[#allocation2 + $0x28] sm:$0xff] %vm199, %v1049
    %1059 = vst.msk [vmem:[#allocation2 + $0x38] sm:$0xff] %vm199, %v1051
    %1060 = vrot.lane.b32.xlu0 %v967, 127
    %v1061 = vpop.permute.xlu0 %1060
    %1062 = vrot.lane.b32.xlu0 %v969, 127
    %v1063 = vpop.permute.xlu0 %1062
    %1064 = vrot.lane.b32.xlu0 %v971, 127
    %v1065 = vpop.permute.xlu0 %1064
    %1066 = vrot.lane.b32.xlu0 %v973, 127
    %v1067 = vpop.permute.xlu0 %1066
    %1072 = vst.msk [vmem:[#allocation2 + $0x88] sm:$0xff] %vm216, %v1061
    %1073 = vst.msk [vmem:[#allocation2 + $0x98] sm:$0xff] %vm216, %v1063
    %1074 = vst.msk [vmem:[#allocation2 + $0xa8] sm:$0xff] %vm216, %v1065
    %1075 = vst.msk [vmem:[#allocation2 + $0xb8] sm:$0xff] %vm216, %v1067
    %1076 = vst.msk [vmem:[#allocation2 + $0x88] sm:$0xff] %vm221, 0.0
    %1077 = vst.msk [vmem:[#allocation2 + $0x98] sm:$0xff] %vm221, 0.0
    %1078 = vst.msk [vmem:[#allocation2 + $0xa8] sm:$0xff] %vm221, 0.0
    %1079 = vst.msk [vmem:[#allocation2 + $0xb8] sm:$0xff] %vm221, 0.0
    %v1080 = vld [vmem:[#allocation2] sm:$0xff]
    %v1081 = vld [vmem:[#allocation2 + $0x8] sm:$0xff]
    %v1082 = vld [vmem:[#allocation2 + $0x10] sm:$0xff]
    %v1083 = vld [vmem:[#allocation2 + $0x18] sm:$0xff]
    %v1084 = vld [vmem:[#allocation2 + $0x20] sm:$0xff]
    %v1085 = vld [vmem:[#allocation2 + $0x28] sm:$0xff]
    %v1086 = vld [vmem:[#allocation2 + $0x30] sm:$0xff]
    %v1087 = vld [vmem:[#allocation2 + $0x38] sm:$0xff]
    %v1088 = vld [vmem:[#allocation2 + $0x40] sm:$0xff]
    %v1089 = vld [vmem:[#allocation2 + $0x48] sm:$0xff]
    %v1090 = vld [vmem:[#allocation2 + $0x50] sm:$0xff]
    %v1091 = vld [vmem:[#allocation2 + $0x58] sm:$0xff]
    %v1092 = vld [vmem:[#allocation2 + $0x60] sm:$0xff]
    %v1093 = vld [vmem:[#allocation2 + $0x68] sm:$0xff]
    %v1094 = vld [vmem:[#allocation2 + $0x70] sm:$0xff]
    %v1095 = vld [vmem:[#allocation2 + $0x78] sm:$0xff]
    %v1096 = vld [vmem:[#allocation2 + $0x80] sm:$0xff]
    %v1097 = vld [vmem:[#allocation2 + $0x88] sm:$0xff]
    %v1098 = vld [vmem:[#allocation2 + $0x90] sm:$0xff]
    %v1099 = vld [vmem:[#allocation2 + $0x98] sm:$0xff]
    %v1100 = vld [vmem:[#allocation2 + $0xa0] sm:$0xff]
    %v1101 = vld [vmem:[#allocation2 + $0xa8] sm:$0xff]
    %v1102 = vld [vmem:[#allocation2 + $0xb0] sm:$0xff]
    %v1103 = vld [vmem:[#allocation2 + $0xb8] sm:$0xff]
    %1105 = vset.pattern.permute.xlu0 0
    %1106 = vperm.xlu0 %1105, %v980
    %v1107 = vpop.permute.xlu0 %1106
    %1110 = vset.pattern.permute.xlu0 0
    %1111 = vperm.xlu0 %1110, %v981
    %v1112 = vpop.permute.xlu0 %1111
    %1115 = vset.pattern.permute.xlu0 0
    %1116 = vperm.xlu0 %1115, %v982
    %v1117 = vpop.permute.xlu0 %1116
    %1120 = vset.pattern.permute.xlu0 0
    %1121 = vperm.xlu0 %1120, %v983
    %v1122 = vpop.permute.xlu0 %1121
    %v1125 = vsel %vm314, %v975, 0
    %v1128 = vsel %vm314, %v976, 0
    %v1131 = vsel %vm314, %v977, 0
    %v1134 = vsel %vm314, %v978, 0
    %1136 = vmatprep.subr.mxu0 %v1081
    %1137 = vmatpush1.msra.mxu0 %v1080
    %1138 = vmatprep.subr.mxu0 %v1083
    %1139 = vmatpush1.msra.mxu0 %v1082
    %1140 = vmatprep.subr.mxu0 %v1085
    %1141 = vmatpush1.msra.mxu0 %v1084
    %1142 = vmatprep.subr.mxu0 %v1087
    %1143 = vmatpush1.msra.mxu0 %v1086
    %1144 = vmatprep.subr.mxu0 %v1089
    %1145 = vmatpush1.msra.mxu0 %v1088
    %1146 = vmatprep.subr.mxu0 %v1091
    %1147 = vmatpush1.msra.mxu0 %v1090
    %1148 = vmatprep.subr.mxu0 %v1093
    %1149 = vmatpush1.msra.mxu0 %v1092
    %1150 = vmatprep.subr.mxu0 %v1095
    %1151 = vmatpush1.msra.mxu0 %v1094
    %1152 = vmatprep.subr.mxu0 %v1097
    %1153 = vmatpush1.msra.mxu0 %v1096
    %1154 = vmatprep.subr.mxu0 %v1099
    %1155 = vmatpush1.msra.mxu0 %v1098
    %1156 = vmatprep.subr.mxu0 %v1101
    %1157 = vmatpush1.msra.mxu0 %v1100
    %1158 = vmatprep.subr.mxu0 %v1103
    %1159 = vmatpush1.msra.mxu0 %v1102
    %1160 = vmatprep.subr.mxu0 0.0
    %1161 = vmatpush1.msra.mxu0 0.0
    %1162 = vmatprep.subr.mxu0 0.0
    %1163 = vmatpush1.msra.mxu0 0.0
    %1164 = vmatprep.subr.mxu0 0.0
    %1165 = vmatpush1.msra.mxu0 0.0
    %1166 = vmatprep.subr.mxu0 0.0
    %1167 = vmatpush1.msra.mxu0 0.0
    %1168 = vmatprep.subr.mxu0 0.0
    %1169 = vmatpush1.msra.mxu0 0.0
    %1170 = vmatprep.subr.mxu0 0.0
    %1171 = vmatpush1.msra.mxu0 0.0
    %1172 = vmatprep.subr.mxu0 0.0
    %1173 = vmatpush1.msra.mxu0 0.0
    %1174 = vmatprep.subr.mxu0 0.0
    %1175 = vmatpush1.msra.mxu0 0.0
    %1176 = vmatprep.subr.mxu0 0.0
    %1177 = vmatpush1.msra.mxu0 0.0
    %1178 = vmatprep.subr.mxu0 0.0
    %1179 = vmatpush1.msra.mxu0 0.0
    %1180 = vmatprep.subr.mxu0 0.0
    %1181 = vmatpush1.msra.mxu0 0.0
    %1182 = vmatprep.subr.mxu0 0.0
    %1183 = vmatpush1.msra.mxu0 0.0
    %1184 = vmatprep.subr.mxu0 0.0
    %1185 = vmatpush1.msra.mxu0 0.0
    %1186 = vmatprep.subr.mxu0 0.0
    %1187 = vmatpush1.msra.mxu0 0.0
    %1188 = vmatprep.subr.mxu0 0.0
    %1189 = vmatpush1.msra.mxu0 0.0
    %1190 = vmatprep.subr.mxu0 0.0
    %1191 = vmatpush1.msra.mxu0 0.0
    %1192 = vmatprep.subr.mxu0 0.0
    %1193 = vmatpush1.msra.mxu0 0.0
    %1194 = vmatprep.subr.mxu0 0.0
    %1195 = vmatpush1.msra.mxu0 0.0
    %1196 = vmatprep.subr.mxu0 0.0
    %1197 = vmatpush1.msra.mxu0 0.0
    %1198 = vmatprep.subr.mxu0 0.0
    %1199 = vmatpush1.msra.mxu0 0.0
    %1200 = vmatprep.mubr.f32.mxu0 0.0
    %1201 = vmatmul.mubr.f32.gmra.mrb[0].mxu0 %v1125
    %v1202 = vpop.f32.mrb[0].mxu0
    %v1203 = vadd.f32 %v1107, %v1202
    %v1204 = vpop.f32.mrb[0].mxu0
    %v1205 = vadd.f32 %v1107, %v1204
    %1206 = vmatprep.mubr.f32.mxu0 0.0
    %1207 = vmatmul.mubr.f32.gmra.mrb[0].mxu0 %v1128
    %v1208 = vpop.f32.mrb[0].mxu0
    %v1209 = vadd.f32 %v1112, %v1208
    %v1210 = vpop.f32.mrb[0].mxu0
    %v1211 = vadd.f32 %v1112, %v1210
    %1212 = vmatprep.mubr.f32.mxu0 0.0
    %1213 = vmatmul.mubr.f32.gmra.mrb[0].mxu0 %v1131
    %v1214 = vpop.f32.mrb[0].mxu0
    %v1215 = vadd.f32 %v1117, %v1214
    %v1216 = vpop.f32.mrb[0].mxu0
    %v1217 = vadd.f32 %v1117, %v1216
    %1218 = vmatprep.mubr.f32.mxu0 0.0
    %1219 = vmatmul.mubr.f32.gmra.mrb[0].mxu0 %v1134
    %v1220 = vpop.f32.mrb[0].mxu0
    %v1221 = vadd.f32 %v1122, %v1220
    %v1222 = vpop.f32.mrb[0].mxu0
    %v1223 = vadd.f32 %v1122, %v1222
    %1224 = vdwg.mxu0
    %v1225 = vmax.f32 %v1203, 0.0
    %v1226 = vmax.f32 %v1205, 0.0
    %v1227 = vmax.f32 %v1209, 0.0
    %v1228 = vmax.f32 %v1211, 0.0
    %v1229 = vmax.f32 %v1215, 0.0
    %v1230 = vmax.f32 %v1217, 0.0
    %v1231 = vmax.f32 %v1221, 0.0
    %v1232 = vmax.f32 %v1223, 0.0
    %v1233 = vadd.f32 %v1225, %v966
    %v1234 = vadd.f32 %v1226, %v967
    %v1235 = vadd.f32 %v1227, %v968
    %v1236 = vadd.f32 %v1228, %v969
    %v1237 = vadd.f32 %v1229, %v970
    %v1238 = vadd.f32 %v1230, %v971
    %v1239 = vadd.f32 %v1231, %v972
    %v1240 = vadd.f32 %v1232, %v973
    %s1241 = scalar_lea.vmem %s3, 128
    %v1242 = vld [vmem:[%s1241] sm:$0xff]
    %v1243 = vld [vmem:[%s1241 + $0x8] sm:$0xff]
    %v1244 = vld [vmem:[%s1241 + $0x10] sm:$0xff]
    %v1245 = vld [vmem:[%s1241 + $0x18] sm:$0xff]
    %s1246 = scalar_lea.vmem %s4, 128
    %v1247 = vld [vmem:[%s1246] sm:$0xff]
    %v1248 = vld [vmem:[%s1246 + $0x8] sm:$0xff]
    %v1249 = vld [vmem:[%s1246 + $0x10] sm:$0xff]
    %v1250 = vld [vmem:[%s1246 + $0x18] sm:$0xff]
    %1251 = vst [vmem:[#allocation2 + $0x40] sm:$0xff] %v1233
    %1252 = vst [vmem:[#allocation2 + $0x48] sm:$0xff] %v1234
    %1253 = vst [vmem:[#allocation2 + $0x50] sm:$0xff] %v1235
    %1254 = vst [vmem:[#allocation2 + $0x58] sm:$0xff] %v1236
    %1255 = vst [vmem:[#allocation2 + $0x60] sm:$0xff] %v1237
    %1256 = vst [vmem:[#allocation2 + $0x68] sm:$0xff] %v1238
    %1257 = vst [vmem:[#allocation2 + $0x70] sm:$0xff] %v1239
    %1258 = vst [vmem:[#allocation2 + $0x78] sm:$0xff] %v1240
    %1259 = vst.msk [vmem:[#allocation2] sm:$0xff] %vm450, 0.0
    %1260 = vst.msk [vmem:[#allocation2 + $0x10] sm:$0xff] %vm450, 0.0
    %1261 = vst.msk [vmem:[#allocation2 + $0x20] sm:$0xff] %vm450, 0.0
    %1262 = vst.msk [vmem:[#allocation2 + $0x30] sm:$0xff] %vm450, 0.0
    %1267 = vrot.lane.b32.xlu0 %v1233, 2
    %v1268 = vpop.permute.xlu0 %1267
    %1269 = vrot.lane.b32.xlu0 %v1235, 2
    %v1270 = vpop.permute.xlu0 %1269
    %1271 = vrot.lane.b32.xlu0 %v1237, 2
    %v1272 = vpop.permute.xlu0 %1271
    %1273 = vrot.lane.b32.xlu0 %v1239, 2
    %v1274 = vpop.permute.xlu0 %1273
    %1279 = vst.msk [vmem:[#allocation2] sm:$0xff] %vm471, %v1268
    %1280 = vst.msk [vmem:[#allocation2 + $0x10] sm:$0xff] %vm471, %v1270
    %1281 = vst.msk [vmem:[#allocation2 + $0x20] sm:$0xff] %vm471, %v1272
    %1282 = vst.msk [vmem:[#allocation2 + $0x30] sm:$0xff] %vm471, %v1274
    %1283 = vrot.lane.b32.xlu0 %v1233, 126
    %v1284 = vpop.permute.xlu0 %1283
    %1285 = vrot.lane.b32.xlu0 %v1235, 126
    %v1286 = vpop.permute.xlu0 %1285
    %1287 = vrot.lane.b32.xlu0 %v1237, 126
    %v1288 = vpop.permute.xlu0 %1287
    %1289 = vrot.lane.b32.xlu0 %v1239, 126
    %v1290 = vpop.permute.xlu0 %1289
    %1295 = vst.msk [vmem:[#allocation2 + $0x80] sm:$0xff] %vm488, %v1284
    %1296 = vst.msk [vmem:[#allocation2 + $0x90] sm:$0xff] %vm488, %v1286
    %1297 = vst.msk [vmem:[#allocation2 + $0xa0] sm:$0xff] %vm488, %v1288
    %1298 = vst.msk [vmem:[#allocation2 + $0xb0] sm:$0xff] %vm488, %v1290
    %1299 = vst.msk [vmem:[#allocation2 + $0x80] sm:$0xff] %vm493, 0.0
    %1300 = vst.msk [vmem:[#allocation2 + $0x90] sm:$0xff] %vm493, 0.0
    %1301 = vst.msk [vmem:[#allocation2 + $0xa0] sm:$0xff] %vm493, 0.0
    %1302 = vst.msk [vmem:[#allocation2 + $0xb0] sm:$0xff] %vm493, 0.0
    %1303 = vst.msk [vmem:[#allocation2 + $0x8] sm:$0xff] %vm450, 0.0
    %1304 = vst.msk [vmem:[#allocation2 + $0x18] sm:$0xff] %vm450, 0.0
    %1305 = vst.msk [vmem:[#allocation2 + $0x28] sm:$0xff] %vm450, 0.0
    %1306 = vst.msk [vmem:[#allocation2 + $0x38] sm:$0xff] %vm450, 0.0
    %1311 = vrot.lane.b32.xlu0 %v1234, 2
    %v1312 = vpop.permute.xlu0 %1311
    %1313 = vrot.lane.b32.xlu0 %v1236, 2
    %v1314 = vpop.permute.xlu0 %1313
    %1315 = vrot.lane.b32.xlu0 %v1238, 2
    %v1316 = vpop.permute.xlu0 %1315
    %1317 = vrot.lane.b32.xlu0 %v1240, 2
    %v1318 = vpop.permute.xlu0 %1317
    %1323 = vst.msk [vmem:[#allocation2 + $0x8] sm:$0xff] %vm471, %v1312
    %1324 = vst.msk [vmem:[#allocation2 + $0x18] sm:$0xff] %vm471, %v1314
    %1325 = vst.msk [vmem:[#allocation2 + $0x28] sm:$0xff] %vm471, %v1316
    %1326 = vst.msk [vmem:[#allocation2 + $0x38] sm:$0xff] %vm471, %v1318
    %1327 = vrot.lane.b32.xlu0 %v1234, 126
    %v1328 = vpop.permute.xlu0 %1327
    %1329 = vrot.lane.b32.xlu0 %v1236, 126
    %v1330 = vpop.permute.xlu0 %1329
    %1331 = vrot.lane.b32.xlu0 %v1238, 126
    %v1332 = vpop.permute.xlu0 %1331
    %1333 = vrot.lane.b32.xlu0 %v1240, 126
    %v1334 = vpop.permute.xlu0 %1333
    %1339 = vst.msk [vmem:[#allocation2 + $0x88] sm:$0xff] %vm488, %v1328
    %1340 = vst.msk [vmem:[#allocation2 + $0x98] sm:$0xff] %vm488, %v1330
    %1341 = vst.msk [vmem:[#allocation2 + $0xa8] sm:$0xff] %vm488, %v1332
    %1342 = vst.msk [vmem:[#allocation2 + $0xb8] sm:$0xff] %vm488, %v1334
    %1343 = vst.msk [vmem:[#allocation2 + $0x88] sm:$0xff] %vm493, 0.0
    %1344 = vst.msk [vmem:[#allocation2 + $0x98] sm:$0xff] %vm493, 0.0
    %1345 = vst.msk [vmem:[#allocation2 + $0xa8] sm:$0xff] %vm493, 0.0
    %1346 = vst.msk [vmem:[#allocation2 + $0xb8] sm:$0xff] %vm493, 0.0
    %v1347 = vld [vmem:[#allocation2] sm:$0xff]
    %v1348 = vld [vmem:[#allocation2 + $0x8] sm:$0xff]
    %v1349 = vld [vmem:[#allocation2 + $0x10] sm:$0xff]
    %v1350 = vld [vmem:[#allocation2 + $0x18] sm:$0xff]
    %v1351 = vld [vmem:[#allocation2 + $0x20] sm:$0xff]
    %v1352 = vld [vmem:[#allocation2 + $0x28] sm:$0xff]
    %v1353 = vld [vmem:[#allocation2 + $0x30] sm:$0xff]
    %v1354 = vld [vmem:[#allocation2 + $0x38] sm:$0xff]
    %v1355 = vld [vmem:[#allocation2 + $0x40] sm:$0xff]
    %v1356 = vld [vmem:[#allocation2 + $0x48] sm:$0xff]
    %v1357 = vld [vmem:[#allocation2 + $0x50] sm:$0xff]
    %v1358 = vld [vmem:[#allocation2 + $0x58] sm:$0xff]
    %v1359 = vld [vmem:[#allocation2 + $0x60] sm:$0xff]
    %v1360 = vld [vmem:[#allocation2 + $0x68] sm:$0xff]
    %v1361 = vld [vmem:[#allocation2 + $0x70] sm:$0xff]
    %v1362 = vld [vmem:[#allocation2 + $0x78] sm:$0xff]
    %v1363 = vld [vmem:[#allocation2 + $0x80] sm:$0xff]
    %v1364 = vld [vmem:[#allocation2 + $0x88] sm:$0xff]
    %v1365 = vld [vmem:[#allocation2 + $0x90] sm:$0xff]
    %v1366 = vld [vmem:[#allocation2 + $0x98] sm:$0xff]
    %v1367 = vld [vmem:[#allocation2 + $0xa0] sm:$0xff]
    %v1368 = vld [vmem:[#allocation2 + $0xa8] sm:$0xff]
    %v1369 = vld [vmem:[#allocation2 + $0xb0] sm:$0xff]
    %v1370 = vld [vmem:[#allocation2 + $0xb8] sm:$0xff]
    %1372 = vset.pattern.permute.xlu0 0
    %1373 = vperm.xlu0 %1372, %v1247
    %v1374 = vpop.permute.xlu0 %1373
    %1377 = vset.pattern.permute.xlu0 0
    %1378 = vperm.xlu0 %1377, %v1248
    %v1379 = vpop.permute.xlu0 %1378
    %1382 = vset.pattern.permute.xlu0 0
    %1383 = vperm.xlu0 %1382, %v1249
    %v1384 = vpop.permute.xlu0 %1383
    %1387 = vset.pattern.permute.xlu0 0
    %1388 = vperm.xlu0 %1387, %v1250
    %v1389 = vpop.permute.xlu0 %1388
    %v1392 = vsel %vm314, %v1242, 0
    %v1395 = vsel %vm314, %v1243, 0
    %v1398 = vsel %vm314, %v1244, 0
    %v1401 = vsel %vm314, %v1245, 0
    %1403 = vmatprep.subr.mxu0 %v1348
    %1404 = vmatpush1.msra.mxu0 %v1347
    %1405 = vmatprep.subr.mxu0 %v1350
    %1406 = vmatpush1.msra.mxu0 %v1349
    %1407 = vmatprep.subr.mxu0 %v1352
    %1408 = vmatpush1.msra.mxu0 %v1351
    %1409 = vmatprep.subr.mxu0 %v1354
    %1410 = vmatpush1.msra.mxu0 %v1353
    %1411 = vmatprep.subr.mxu0 %v1356
    %1412 = vmatpush1.msra.mxu0 %v1355
    %1413 = vmatprep.subr.mxu0 %v1358
    %1414 = vmatpush1.msra.mxu0 %v1357
    %1415 = vmatprep.subr.mxu0 %v1360
    %1416 = vmatpush1.msra.mxu0 %v1359
    %1417 = vmatprep.subr.mxu0 %v1362
    %1418 = vmatpush1.msra.mxu0 %v1361
    %1419 = vmatprep.subr.mxu0 %v1364
    %1420 = vmatpush1.msra.mxu0 %v1363
    %1421 = vmatprep.subr.mxu0 %v1366
    %1422 = vmatpush1.msra.mxu0 %v1365
    %1423 = vmatprep.subr.mxu0 %v1368
    %1424 = vmatpush1.msra.mxu0 %v1367
    %1425 = vmatprep.subr.mxu0 %v1370
    %1426 = vmatpush1.msra.mxu0 %v1369
    %1427 = vmatprep.subr.mxu0 0.0
    %1428 = vmatpush1.msra.mxu0 0.0
    %1429 = vmatprep.subr.mxu0 0.0
    %1430 = vmatpush1.msra.mxu0 0.0
    %1431 = vmatprep.subr.mxu0 0.0
    %1432 = vmatpush1.msra.mxu0 0.0
    %1433 = vmatprep.subr.mxu0 0.0
    %1434 = vmatpush1.msra.mxu0 0.0
    %1435 = vmatprep.subr.mxu0 0.0
    %1436 = vmatpush1.msra.mxu0 0.0
    %1437 = vmatprep.subr.mxu0 0.0
    %1438 = vmatpush1.msra.mxu0 0.0
    %1439 = vmatprep.subr.mxu0 0.0
    %1440 = vmatpush1.msra.mxu0 0.0
    %1441 = vmatprep.subr.mxu0 0.0
    %1442 = vmatpush1.msra.mxu0 0.0
    %1443 = vmatprep.subr.mxu0 0.0
    %1444 = vmatpush1.msra.mxu0 0.0
    %1445 = vmatprep.subr.mxu0 0.0
    %1446 = vmatpush1.msra.mxu0 0.0
    %1447 = vmatprep.subr.mxu0 0.0
    %1448 = vmatpush1.msra.mxu0 0.0
    %1449 = vmatprep.subr.mxu0 0.0
    %1450 = vmatpush1.msra.mxu0 0.0
    %1451 = vmatprep.subr.mxu0 0.0
    %1452 = vmatpush1.msra.mxu0 0.0
    %1453 = vmatprep.subr.mxu0 0.0
    %1454 = vmatpush1.msra.mxu0 0.0
    %1455 = vmatprep.subr.mxu0 0.0
    %1456 = vmatpush1.msra.mxu0 0.0
    %1457 = vmatprep.subr.mxu0 0.0
    %1458 = vmatpush1.msra.mxu0 0.0
    %1459 = vmatprep.subr.mxu0 0.0
    %1460 = vmatpush1.msra.mxu0 0.0
    %1461 = vmatprep.subr.mxu0 0.0
    %1462 = vmatpush1.msra.mxu0 0.0
    %1463 = vmatprep.subr.mxu0 0.0
    %1464 = vmatpush1.msra.mxu0 0.0
    %1465 = vmatprep.subr.mxu0 0.0
    %1466 = vmatpush1.msra.mxu0 0.0
    %1467 = vmatprep.mubr.f32.mxu0 0.0
    %1468 = vmatmul.mubr.f32.gmra.mrb[0].mxu0 %v1392
    %v1469 = vpop.f32.mrb[0].mxu0
    %v1470 = vadd.f32 %v1374, %v1469
    %v1471 = vpop.f32.mrb[0].mxu0
    %v1472 = vadd.f32 %v1374, %v1471
    %1473 = vmatprep.mubr.f32.mxu0 0.0
    %1474 = vmatmul.mubr.f32.gmra.mrb[0].mxu0 %v1395
    %v1475 = vpop.f32.mrb[0].mxu0
    %v1476 = vadd.f32 %v1379, %v1475
    %v1477 = vpop.f32.mrb[0].mxu0
    %v1478 = vadd.f32 %v1379, %v1477
    %1479 = vmatprep.mubr.f32.mxu0 0.0
    %1480 = vmatmul.mubr.f32.gmra.mrb[0].mxu0 %v1398
    %v1481 = vpop.f32.mrb[0].mxu0
    %v1482 = vadd.f32 %v1384, %v1481
    %v1483 = vpop.f32.mrb[0].mxu0
    %v1484 = vadd.f32 %v1384, %v1483
    %1485 = vmatprep.mubr.f32.mxu0 0.0
    %1486 = vmatmul.mubr.f32.gmra.mrb[0].mxu0 %v1401
    %v1487 = vpop.f32.mrb[0].mxu0
    %v1488 = vadd.f32 %v1389, %v1487
    %v1489 = vpop.f32.mrb[0].mxu0
    %v1490 = vadd.f32 %v1389, %v1489
    %1491 = vdwg.mxu0
    %v1492 = vmax.f32 %v1470, 0.0
    %v1493 = vmax.f32 %v1472, 0.0
    %v1494 = vmax.f32 %v1476, 0.0
    %v1495 = vmax.f32 %v1478, 0.0
    %v1496 = vmax.f32 %v1482, 0.0
    %v1497 = vmax.f32 %v1484, 0.0
    %v1498 = vmax.f32 %v1488, 0.0
    %v1499 = vmax.f32 %v1490, 0.0
    %v1500 = vadd.f32 %v1492, %v1233
    %v1501 = vadd.f32 %v1493, %v1234
    %v1502 = vadd.f32 %v1494, %v1235
    %v1503 = vadd.f32 %v1495, %v1236
    %v1504 = vadd.f32 %v1496, %v1237
    %v1505 = vadd.f32 %v1497, %v1238
    %v1506 = vadd.f32 %v1498, %v1239
    %v1507 = vadd.f32 %v1499, %v1240
    %s1508 = scalar_lea.vmem %s3, 160
    %v1509 = vld [vmem:[%s1508] sm:$0xff]
    %v1510 = vld [vmem:[%s1508 + $0x8] sm:$0xff]
    %v1511 = vld [vmem:[%s1508 + $0x10] sm:$0xff]
    %v1512 = vld [vmem:[%s1508 + $0x18] sm:$0xff]
    %s1513 = scalar_lea.vmem %s4, 160
    %v1514 = vld [vmem:[%s1513] sm:$0xff]
    %v1515 = vld [vmem:[%s1513 + $0x8] sm:$0xff]
    %v1516 = vld [vmem:[%s1513 + $0x10] sm:$0xff]
    %v1517 = vld [vmem:[%s1513 + $0x18] sm:$0xff]
    %1518 = vst [vmem:[#allocation2 + $0x40] sm:$0xff] %v1500
    %1519 = vst [vmem:[#allocation2 + $0x48] sm:$0xff] %v1501
    %1520 = vst [vmem:[#allocation2 + $0x50] sm:$0xff] %v1502
    %1521 = vst [vmem:[#allocation2 + $0x58] sm:$0xff] %v1503
    %1522 = vst [vmem:[#allocation2 + $0x60] sm:$0xff] %v1504
    %1523 = vst [vmem:[#allocation2 + $0x68] sm:$0xff] %v1505
    %1524 = vst [vmem:[#allocation2 + $0x70] sm:$0xff] %v1506
    %1525 = vst [vmem:[#allocation2 + $0x78] sm:$0xff] %v1507
    %1526 = vst.msk [vmem:[#allocation2] sm:$0xff] %vm721, 0.0
    %1527 = vst.msk [vmem:[#allocation2 + $0x10] sm:$0xff] %vm721, 0.0
    %1528 = vst.msk [vmem:[#allocation2 + $0x20] sm:$0xff] %vm721, 0.0
    %1529 = vst.msk [vmem:[#allocation2 + $0x30] sm:$0xff] %vm721, 0.0
    %1534 = vrot.lane.b32.xlu0 %v1500, 4
    %v1535 = vpop.permute.xlu0 %1534
    %1536 = vrot.lane.b32.xlu0 %v1502, 4
    %v1537 = vpop.permute.xlu0 %1536
    %1538 = vrot.lane.b32.xlu0 %v1504, 4
    %v1539 = vpop.permute.xlu0 %1538
    %1540 = vrot.lane.b32.xlu0 %v1506, 4
    %v1541 = vpop.permute.xlu0 %1540
    %1546 = vst.msk [vmem:[#allocation2] sm:$0xff] %vm742, %v1535
    %1547 = vst.msk [vmem:[#allocation2 + $0x10] sm:$0xff] %vm742, %v1537
    %1548 = vst.msk [vmem:[#allocation2 + $0x20] sm:$0xff] %vm742, %v1539
    %1549 = vst.msk [vmem:[#allocation2 + $0x30] sm:$0xff] %vm742, %v1541
    %1550 = vrot.lane.b32.xlu0 %v1500, 124
    %v1551 = vpop.permute.xlu0 %1550
    %1552 = vrot.lane.b32.xlu0 %v1502, 124
    %v1553 = vpop.permute.xlu0 %1552
    %1554 = vrot.lane.b32.xlu0 %v1504, 124
    %v1555 = vpop.permute.xlu0 %1554
    %1556 = vrot.lane.b32.xlu0 %v1506, 124
    %v1557 = vpop.permute.xlu0 %1556
    %1562 = vst.msk [vmem:[#allocation2 + $0x80] sm:$0xff] %vm759, %v1551
    %1563 = vst.msk [vmem:[#allocation2 + $0x90] sm:$0xff] %vm759, %v1553
    %1564 = vst.msk [vmem:[#allocation2 + $0xa0] sm:$0xff] %vm759, %v1555
    %1565 = vst.msk [vmem:[#allocation2 + $0xb0] sm:$0xff] %vm759, %v1557
    %1566 = vst.msk [vmem:[#allocation2 + $0x80] sm:$0xff] %vm764, 0.0
    %1567 = vst.msk [vmem:[#allocation2 + $0x90] sm:$0xff] %vm764, 0.0
    %1568 = vst.msk [vmem:[#allocation2 + $0xa0] sm:$0xff] %vm764, 0.0
    %1569 = vst.msk [vmem:[#allocation2 + $0xb0] sm:$0xff] %vm764, 0.0
    %1570 = vst.msk [vmem:[#allocation2 + $0x8] sm:$0xff] %vm721, 0.0
    %1571 = vst.msk [vmem:[#allocation2 + $0x18] sm:$0xff] %vm721, 0.0
    %1572 = vst.msk [vmem:[#allocation2 + $0x28] sm:$0xff] %vm721, 0.0
    %1573 = vst.msk [vmem:[#allocation2 + $0x38] sm:$0xff] %vm721, 0.0
    %1578 = vrot.lane.b32.xlu0 %v1501, 4
    %v1579 = vpop.permute.xlu0 %1578
    %1580 = vrot.lane.b32.xlu0 %v1503, 4
    %v1581 = vpop.permute.xlu0 %1580
    %1582 = vrot.lane.b32.xlu0 %v1505, 4
    %v1583 = vpop.permute.xlu0 %1582
    %1584 = vrot.lane.b32.xlu0 %v1507, 4
    %v1585 = vpop.permute.xlu0 %1584
    %1590 = vst.msk [vmem:[#allocation2 + $0x8] sm:$0xff] %vm742, %v1579
    %1591 = vst.msk [vmem:[#allocation2 + $0x18] sm:$0xff] %vm742, %v1581
    %1592 = vst.msk [vmem:[#allocation2 + $0x28] sm:$0xff] %vm742, %v1583
    %1593 = vst.msk [vmem:[#allocation2 + $0x38] sm:$0xff] %vm742, %v1585
    %1594 = vrot.lane.b32.xlu0 %v1501, 124
    %v1595 = vpop.permute.xlu0 %1594
    %1596 = vrot.lane.b32.xlu0 %v1503, 124
    %v1597 = vpop.permute.xlu0 %1596
    %1598 = vrot.lane.b32.xlu0 %v1505, 124
    %v1599 = vpop.permute.xlu0 %1598
    %1600 = vrot.lane.b32.xlu0 %v1507, 124
    %v1601 = vpop.permute.xlu0 %1600
    %1606 = vst.msk [vmem:[#allocation2 + $0x88] sm:$0xff] %vm759, %v1595
    %1607 = vst.msk [vmem:[#allocation2 + $0x98] sm:$0xff] %vm759, %v1597
    %1608 = vst.msk [vmem:[#allocation2 + $0xa8] sm:$0xff] %vm759, %v1599
    %1609 = vst.msk [vmem:[#allocation2 + $0xb8] sm:$0xff] %vm759, %v1601
    %1610 = vst.msk [vmem:[#allocation2 + $0x88] sm:$0xff] %vm764, 0.0
    %1611 = vst.msk [vmem:[#allocation2 + $0x98] sm:$0xff] %vm764, 0.0
    %1612 = vst.msk [vmem:[#allocation2 + $0xa8] sm:$0xff] %vm764, 0.0
    %1613 = vst.msk [vmem:[#allocation2 + $0xb8] sm:$0xff] %vm764, 0.0
    %v1614 = vld [vmem:[#allocation2] sm:$0xff]
    %v1615 = vld [vmem:[#allocation2 + $0x8] sm:$0xff]
    %v1616 = vld [vmem:[#allocation2 + $0x10] sm:$0xff]
    %v1617 = vld [vmem:[#allocation2 + $0x18] sm:$0xff]
    %v1618 = vld [vmem:[#allocation2 + $0x20] sm:$0xff]
    %v1619 = vld [vmem:[#allocation2 + $0x28] sm:$0xff]
    %v1620 = vld [vmem:[#allocation2 + $0x30] sm:$0xff]
    %v1621 = vld [vmem:[#allocation2 + $0x38] sm:$0xff]
    %v1622 = vld [vmem:[#allocation2 + $0x40] sm:$0xff]
    %v1623 = vld [vmem:[#allocation2 + $0x48] sm:$0xff]
    %v1624 = vld [vmem:[#allocation2 + $0x50] sm:$0xff]
    %v1625 = vld [vmem:[#allocation2 + $0x58] sm:$0xff]
    %v1626 = vld [vmem:[#allocation2 + $0x60] sm:$0xff]
    %v1627 = vld [vmem:[#allocation2 + $0x68] sm:$0xff]
    %v1628 = vld [vmem:[#allocation2 + $0x70] sm:$0xff]
    %v1629 = vld [vmem:[#allocation2 + $0x78] sm:$0xff]
    %v1630 = vld [vmem:[#allocation2 + $0x80] sm:$0xff]
    %v1631 = vld [vmem:[#allocation2 + $0x88] sm:$0xff]
    %v1632 = vld [vmem:[#allocation2 + $0x90] sm:$0xff]
    %v1633 = vld [vmem:[#allocation2 + $0x98] sm:$0xff]
    %v1634 = vld [vmem:[#allocation2 + $0xa0] sm:$0xff]
    %v1635 = vld [vmem:[#allocation2 + $0xa8] sm:$0xff]
    %v1636 = vld [vmem:[#allocation2 + $0xb0] sm:$0xff]
    %v1637 = vld [vmem:[#allocation2 + $0xb8] sm:$0xff]
    %1639 = vset.pattern.permute.xlu0 0
    %1640 = vperm.xlu0 %1639, %v1514
    %v1641 = vpop.permute.xlu0 %1640
    %1644 = vset.pattern.permute.xlu0 0
    %1645 = vperm.xlu0 %1644, %v1515
    %v1646 = vpop.permute.xlu0 %1645
    %1649 = vset.pattern.permute.xlu0 0
    %1650 = vperm.xlu0 %1649, %v1516
    %v1651 = vpop.permute.xlu0 %1650
    %1654 = vset.pattern.permute.xlu0 0
    %1655 = vperm.xlu0 %1654, %v1517
    %v1656 = vpop.permute.xlu0 %1655
    %v1659 = vsel %vm314, %v1509, 0
    %v1662 = vsel %vm314, %v1510, 0
    %v1665 = vsel %vm314, %v1511, 0
    %v1668 = vsel %vm314, %v1512, 0
    %1670 = vmatprep.subr.mxu0 %v1615
    %1671 = vmatpush1.msra.mxu0 %v1614
    %1672 = vmatprep.subr.mxu0 %v1617
    %1673 = vmatpush1.msra.mxu0 %v1616
    %1674 = vmatprep.subr.mxu0 %v1619
    %1675 = vmatpush1.msra.mxu0 %v1618
    %1676 = vmatprep.subr.mxu0 %v1621
    %1677 = vmatpush1.msra.mxu0 %v1620
    %1678 = vmatprep.subr.mxu0 %v1623
    %1679 = vmatpush1.msra.mxu0 %v1622
    %1680 = vmatprep.subr.mxu0 %v1625
    %1681 = vmatpush1.msra.mxu0 %v1624
    %1682 = vmatprep.subr.mxu0 %v1627
    %1683 = vmatpush1.msra.mxu0 %v1626
    %1684 = vmatprep.subr.mxu0 %v1629
    %1685 = vmatpush1.msra.mxu0 %v1628
    %1686 = vmatprep.subr.mxu0 %v1631
    %1687 = vmatpush1.msra.mxu0 %v1630
    %1688 = vmatprep.subr.mxu0 %v1633
    %1689 = vmatpush1.msra.mxu0 %v1632
    %1690 = vmatprep.subr.mxu0 %v1635
    %1691 = vmatpush1.msra.mxu0 %v1634
    %1692 = vmatprep.subr.mxu0 %v1637
    %1693 = vmatpush1.msra.mxu0 %v1636
    %1694 = vmatprep.subr.mxu0 0.0
    %1695 = vmatpush1.msra.mxu0 0.0
    %1696 = vmatprep.subr.mxu0 0.0
    %1697 = vmatpush1.msra.mxu0 0.0
    %1698 = vmatprep.subr.mxu0 0.0
    %1699 = vmatpush1.msra.mxu0 0.0
    %1700 = vmatprep.subr.mxu0 0.0
    %1701 = vmatpush1.msra.mxu0 0.0
    %1702 = vmatprep.subr.mxu0 0.0
    %1703 = vmatpush1.msra.mxu0 0.0
    %1704 = vmatprep.subr.mxu0 0.0
    %1705 = vmatpush1.msra.mxu0 0.0
    %1706 = vmatprep.subr.mxu0 0.0
    %1707 = vmatpush1.msra.mxu0 0.0
    %1708 = vmatprep.subr.mxu0 0.0
    %1709 = vmatpush1.msra.mxu0 0.0
    %1710 = vmatprep.subr.mxu0 0.0
    %1711 = vmatpush1.msra.mxu0 0.0
    %1712 = vmatprep.subr.mxu0 0.0
    %1713 = vmatpush1.msra.mxu0 0.0
    %1714 = vmatprep.subr.mxu0 0.0
    %1715 = vmatpush1.msra.mxu0 0.0
    %1716 = vmatprep.subr.mxu0 0.0
    %1717 = vmatpush1.msra.mxu0 0.0
    %1718 = vmatprep.subr.mxu0 0.0
    %1719 = vmatpush1.msra.mxu0 0.0
    %1720 = vmatprep.subr.mxu0 0.0
    %1721 = vmatpush1.msra.mxu0 0.0
    %1722 = vmatprep.subr.mxu0 0.0
    %1723 = vmatpush1.msra.mxu0 0.0
    %1724 = vmatprep.subr.mxu0 0.0
    %1725 = vmatpush1.msra.mxu0 0.0
    %1726 = vmatprep.subr.mxu0 0.0
    %1727 = vmatpush1.msra.mxu0 0.0
    %1728 = vmatprep.subr.mxu0 0.0
    %1729 = vmatpush1.msra.mxu0 0.0
    %1730 = vmatprep.subr.mxu0 0.0
    %1731 = vmatpush1.msra.mxu0 0.0
    %1732 = vmatprep.subr.mxu0 0.0
    %1733 = vmatpush1.msra.mxu0 0.0
    %1734 = vmatprep.mubr.f32.mxu0 0.0
    %1735 = vmatmul.mubr.f32.gmra.mrb[0].mxu0 %v1659
    %v1736 = vpop.f32.mrb[0].mxu0
    %v1737 = vadd.f32 %v1641, %v1736
    %v1738 = vpop.f32.mrb[0].mxu0
    %v1739 = vadd.f32 %v1641, %v1738
    %1740 = vmatprep.mubr.f32.mxu0 0.0
    %1741 = vmatmul.mubr.f32.gmra.mrb[0].mxu0 %v1662
    %v1742 = vpop.f32.mrb[0].mxu0
    %v1743 = vadd.f32 %v1646, %v1742
    %v1744 = vpop.f32.mrb[0].mxu0
    %v1745 = vadd.f32 %v1646, %v1744
    %1746 = vmatprep.mubr.f32.mxu0 0.0
    %1747 = vmatmul.mubr.f32.gmra.mrb[0].mxu0 %v1665
    %v1748 = vpop.f32.mrb[0].mxu0
    %v1749 = vadd.f32 %v1651, %v1748
    %v1750 = vpop.f32.mrb[0].mxu0
    %v1751 = vadd.f32 %v1651, %v1750
    %1752 = vmatprep.mubr.f32.mxu0 0.0
    %1753 = vmatmul.mubr.f32.gmra.mrb[0].mxu0 %v1668
    %v1754 = vpop.f32.mrb[0].mxu0
    %v1755 = vadd.f32 %v1656, %v1754
    %v1756 = vpop.f32.mrb[0].mxu0
    %v1757 = vadd.f32 %v1656, %v1756
    %1758 = vdwg.mxu0
    %v1759 = vmax.f32 %v1737, 0.0
    %v1760 = vmax.f32 %v1739, 0.0
    %v1761 = vmax.f32 %v1743, 0.0
    %v1762 = vmax.f32 %v1745, 0.0
    %v1763 = vmax.f32 %v1749, 0.0
    %v1764 = vmax.f32 %v1751, 0.0
    %v1765 = vmax.f32 %v1755, 0.0
    %v1766 = vmax.f32 %v1757, 0.0
    %v1767 = vadd.f32 %v1759, %v1500
    %v1768 = vadd.f32 %v1760, %v1501
    %v1769 = vadd.f32 %v1761, %v1502
    %v1770 = vadd.f32 %v1762, %v1503
    %v1771 = vadd.f32 %v1763, %v1504
    %v1772 = vadd.f32 %v1764, %v1505
    %v1773 = vadd.f32 %v1765, %v1506
    %v1774 = vadd.f32 %v1766, %v1507
    %v1775 = vld [vmem:[%s5] sm:$0xff]
    %v1776 = vld [vmem:[%s6] sm:$0xff]
    %1778 = vset.pattern.permute.xlu0 0
    %1779 = vperm.xlu0 %1778, %v1776
    %v1780 = vpop.permute.xlu0 %1779
    %vm1782 = vcmask 261120
    %v1784 = vsel %vm1782, %v1775, 0
    %1786 = vmatprep.subr.mxu0 %v1768
    %1787 = vmatpush1.msra.mxu0 %v1767
    %1788 = vmatprep.subr.mxu0 %v1770
    %1789 = vmatpush1.msra.mxu0 %v1769
    %1790 = vmatprep.subr.mxu0 %v1772
    %1791 = vmatpush1.msra.mxu0 %v1771
    %1792 = vmatprep.subr.mxu0 %v1774
    %1793 = vmatpush1.msra.mxu0 %v1773
    %1794 = vmatprep.subr.mxu0 0.0
    %1795 = vmatpush1.msra.mxu0 0.0
    %1796 = vmatprep.subr.mxu0 0.0
    %1797 = vmatpush1.msra.mxu0 0.0
    %1798 = vmatprep.subr.mxu0 0.0
    %1799 = vmatpush1.msra.mxu0 0.0
    %1800 = vmatprep.subr.mxu0 0.0
    %1801 = vmatpush1.msra.mxu0 0.0
    %1802 = vmatprep.subr.mxu0 0.0
    %1803 = vmatpush1.msra.mxu0 0.0
    %1804 = vmatprep.subr.mxu0 0.0
    %1805 = vmatpush1.msra.mxu0 0.0
    %1806 = vmatprep.subr.mxu0 0.0
    %1807 = vmatpush1.msra.mxu0 0.0
    %1808 = vmatprep.subr.mxu0 0.0
    %1809 = vmatpush1.msra.mxu0 0.0
    %1810 = vmatprep.subr.mxu0 0.0
    %1811 = vmatpush1.msra.mxu0 0.0
    %1812 = vmatprep.subr.mxu0 0.0
    %1813 = vmatpush1.msra.mxu0 0.0
    %1814 = vmatprep.subr.mxu0 0.0
    %1815 = vmatpush1.msra.mxu0 0.0
    %1816 = vmatprep.subr.mxu0 0.0
    %1817 = vmatpush1.msra.mxu0 0.0
    %1818 = vmatprep.subr.mxu0 0.0
    %1819 = vmatpush1.msra.mxu0 0.0
    %1820 = vmatprep.subr.mxu0 0.0
    %1821 = vmatpush1.msra.mxu0 0.0
    %1822 = vmatprep.subr.mxu0 0.0
    %1823 = vmatpush1.msra.mxu0 0.0
    %1824 = vmatprep.subr.mxu0 0.0
    %1825 = vmatpush1.msra.mxu0 0.0
    %1826 = vmatprep.subr.mxu0 0.0
    %1827 = vmatpush1.msra.mxu0 0.0
    %1828 = vmatprep.subr.mxu0 0.0
    %1829 = vmatpush1.msra.mxu0 0.0
    %1830 = vmatprep.subr.mxu0 0.0
    %1831 = vmatpush1.msra.mxu0 0.0
    %1832 = vmatprep.subr.mxu0 0.0
    %1833 = vmatpush1.msra.mxu0 0.0
    %1834 = vmatprep.subr.mxu0 0.0
    %1835 = vmatpush1.msra.mxu0 0.0
    %1836 = vmatprep.subr.mxu0 0.0
    %1837 = vmatpush1.msra.mxu0 0.0
    %1838 = vmatprep.subr.mxu0 0.0
    %1839 = vmatpush1.msra.mxu0 0.0
    %1840 = vmatprep.subr.mxu0 0.0
    %1841 = vmatpush1.msra.mxu0 0.0
    %1842 = vmatprep.subr.mxu0 0.0
    %1843 = vmatpush1.msra.mxu0 0.0
    %1844 = vmatprep.subr.mxu0 0.0
    %1845 = vmatpush1.msra.mxu0 0.0
    %1846 = vmatprep.subr.mxu0 0.0
    %1847 = vmatpush1.msra.mxu0 0.0
    %1848 = vmatprep.subr.mxu0 0.0
    %1849 = vmatpush1.msra.mxu0 0.0
    %1850 = vmatprep.mubr.f32.mxu0 0.0
    %1851 = vmatmul.mubr.f32.gmra.mrb[0].mxu0 %v1784
    %v1852 = vpop.f32.mrb[0].mxu0
    %v1853 = vadd.f32 %v1780, %v1852
    %v1854 = vpop.f32.mrb[0].mxu0
    %v1855 = vadd.f32 %v1780, %v1854
    %1856 = vdwg.mxu0
    %1857 = vst [vmem:[#allocation3] sm:$0xff] %v1853
    %s1858 = scalar_lea.vmem [#allocation3], 8
    %1859 = vst [vmem:[%s1858] sm:$0xff] %v1855
    // Predicated region
    $region30: #{timeinator_forward.1} parent=1 // pred_check
      _
    $region31: #{timeinator_forward.1} parent=1 // pred_check_branch
      %1861 = sbr.rel (0) target = $region33
    $region32: #{timeinator_forward.1} parent=1 // pred_region
      %s1863 = ssub.s32 256, 256
      %1864 = vsyncadd [#allocation4], %s1863
      %s1865 = sshll.u32 [#allocation3], 4
      %s1866 = int_to_ptr.vmem [resolvable:$true] %s1865
      %1871 = dma.vmem_to_hbm [thread:$0]  %s1866, 256, %s7, [#allocation4], 128, 128, 8
    $region33: #{timeinator_forward.1} parent=1 // pred_fallthru
      _
    // Predicated region
    $region34: #{timeinator_forward.1} parent=1 // pred_check
      _
    $region35: #{timeinator_forward.1} parent=1 // pred_check_branch
      %1873 = sbr.rel (0) target = $region37
    $region36: #{timeinator_forward.1} parent=1 // pred_region
      %1874 = dma.done [#allocation4], 256
    $region37: #{timeinator_forward.1} parent=1 // pred_fallthru
      _
    %1875 = vsyncpa [#allocation4], 1

</llo_original>
